<compile_context>
chip_gen: v6e
topology: v6e:2x2x1
jax: 0.10.0
libtpu: 0.0.40
codegen_flags: <defaults>
</compile_context>

<pallas_src>
import functools

import jax
import jax.numpy as jnp
from jax import lax
from jax.experimental import pallas as pl
from jax.experimental.pallas import tpu as pltpu


def conv_gru_kernel(x_ref, h_ref, wx_ref, wh_ref, b_ref, wc_ref, out_ref,
                    rh_ref, *, M, K, pad, WCh, cdt):
    """One grid step = a block of batches flattened into M = Bblk*(H+2p) rows.

    Frames: ref row j in [0, M+K-1); flat/accumulator row t = j - pad in [0, M);
    valid output rows sit at t = c*Hp + pad + r (c = local batch, r = out row).

    x_ref  : (1, M+K-1, W*Cinp) f32   H-padded per batch + step-edge rows
    h_ref  : (1, M+K-1, W*Ch)   f32   same framing (borders are exact zeros)
    wx_ref : (K, W*Cinp, 3*W*Ch) cdt  banded-W weights, cols [reset|update|cand_x]
    wh_ref : (K, W*Ch,   2*W*Ch) cdt  banded-W weights, cols [reset|update]
    b_ref  : (1, 3*W*Ch) f32
    wc_ref : (K, W*Ch, W*Ch) cdt      banded-W candidate (reset*h) weights
    out_ref: (1, M, W*Ch) f32         padded-frame output (wrapper slices rows)
    rh_ref : (M+K-1, W*Ch) f32        scratch; interior fully rewritten per step
    """
    # ---- fused gates + candidate-x conv: one fat matmul per row tap dy ------
    acc_x = jnp.zeros((M, 3 * WCh), jnp.float32)
    acc_h = jnp.zeros((M, 2 * WCh), jnp.float32)
    for dy in range(K):
        xw = x_ref[0, dy:dy + M, :].astype(cdt)
        hw = h_ref[0, dy:dy + M, :].astype(cdt)
        acc_x = acc_x + jnp.dot(xw, wx_ref[dy],
                                preferred_element_type=jnp.float32)
        acc_h = acc_h + jnp.dot(hw, wh_ref[dy],
                                preferred_element_type=jnp.float32)
    acc_x = acc_x + b_ref[...]                         # (M,3WCh) + (1,3WCh)

    gates = acc_x[:, :2 * WCh] + acc_h
    reset = jax.nn.sigmoid(gates[:, :WCh])             # gamma -> reset
    update = jax.nn.sigmoid(gates[:, WCh:])            # beta  -> update
    cand = acc_x[:, 2 * WCh:]                          # x-part (+ b_can folded)

    h_el = h_ref[0, pad:pad + M, :]                    # f32, flat-frame aligned

    # ---- stage reset*h in the padded frame.  Per-batch border rows are zero
    #      because h is zero there; only the K-1 step-edge rows need zeroing.
    if pad > 0:
        rh_ref[0:pad, :] = jnp.zeros((pad, WCh), jnp.float32)
    if K - 1 - pad > 0:
        rh_ref[pad + M:pad + M + (K - 1 - pad), :] = jnp.zeros(
            (K - 1 - pad, WCh), jnp.float32)
    rh_ref[pad:pad + M, :] = reset * h_el

    # ---- candidate conv, reset*h part: one fat matmul per row tap dy --------
    for dy in range(K):
        cand = cand + jnp.dot(rh_ref[dy:dy + M, :].astype(cdt), wc_ref[dy],
                              preferred_element_type=jnp.float32)
    cnm = jnp.tanh(cand)

    out_ref[0] = ((1.0 - update) * h_el + update * cnm).astype(out_ref.dtype)


def _band_weights(w_taps, W, pad):
    """HWIO taps (K, K, Ci, Co) -> (K, W*Ci, W*Co) W-banded matrices.

    big[dy, u*Ci+ci, v*Co+co] = w_taps[dy, dx, ci, co] where u = v + dx - pad
    (out-of-range u dropped) == stride-1, padding=`pad` conv along W.
    """
    K1, K2, Ci, Co = w_taps.shape
    big = jnp.zeros((K1, W * Ci, W * Co), jnp.float32)
    for dx in range(K2):
        e = jnp.eye(W, W, k=pad - dx, dtype=jnp.float32)          # e[u, v]
        blk = jnp.einsum("uv,dio->duivo", e, w_taps[:, dx].astype(jnp.float32))
        big = big + blk.reshape(K1, W * Ci, W * Co)
    return big


def _pick_batch_block(B, Hp):
    """Largest divisor of B keeping >=2 grid steps (v7x megacore) while not
    pushing M = Bblk*Hp far past ~128 MXU rows."""
    if B <= 1:
        return 1
    target = max(1, -(-128 // Hp))
    best = 1
    for c in range(1, B // 2 + 1):
        if B % c == 0 and c <= target:
            best = c
    return best


def conv_gru_block(x, h, w_gates, b_gates, w_can, b_can, *, K=3, pad=1,
                   compute_dtype=jnp.bfloat16, batch_block=None):
    """x: (B,H,W,Cin), h: (B,H,W,Ch); weights HWIO, biases (Cout,). Returns h_next."""
    B, H, W, Cin = x.shape
    Ch = h.shape[-1]
    assert 2 * pad == K - 1, "ConvGRU blend needs same-size conv (2*pad == K-1)"
    Hp = H + 2 * pad
    WCh = W * Ch
    cdt = compute_dtype

    # pad Cin so the x contraction dim W*Cinp is a multiple of 128 when possible
    lane = 128
    WCin = W * Cin
    if WCin % lane:
        t = -(-WCin // lane) * lane
        Cinp = t // W if t % W == 0 else Cin
    else:
        Cinp = Cin
    Lx, Lh = W * Cinp, W * Ch

    if batch_block is None:
        batch_block = _pick_batch_block(B, Hp)
    assert B % batch_block == 0
    S = B // batch_block                    # grid steps
    M = batch_block * Hp                    # matmul rows per step
    Mp = M + K - 1                          # + step-edge rows for tap windows

    # --- activations: H-pad per batch, channel-pad x, add step-edge rows ----
    xp = jnp.pad(x, ((0, 0), (pad, pad), (0, 0), (0, Cinp - Cin)))
    xp = xp.reshape(S, M, Lx)
    xp = jnp.pad(xp, ((0, 0), (pad, K - 1 - pad), (0, 0))).astype(jnp.float32)
    hp = jnp.pad(h, ((0, 0), (pad, pad), (0, 0), (0, 0))).reshape(S, M, Lh)
    hp = jnp.pad(hp, ((0, 0), (pad, K - 1 - pad), (0, 0))).astype(jnp.float32)

    # --- banded weights: x-rows fused over [reset|update|cand_x], h-rows over
    #     [reset|update]; candidate h-part (reset*h) kept separate. -----------
    wg = w_gates.astype(jnp.float32)
    wc = w_can.astype(jnp.float32)

    def pad_ci(tap):
        return jnp.pad(tap, ((0, 0), (0, 0), (0, Cinp - Cin), (0, 0)))

    band = functools.partial(_band_weights, W=W, pad=pad)
    wx_big = jnp.concatenate([band(pad_ci(wg[:, :, :Cin, :Ch])),
                              band(pad_ci(wg[:, :, :Cin, Ch:])),
                              band(pad_ci(wc[:, :, :Cin, :]))], axis=-1)
    wh_big = jnp.concatenate([band(wg[:, :, Cin:, :Ch]),
                              band(wg[:, :, Cin:, Ch:])], axis=-1)
    wc_big = band(wc[:, :, Cin:, :])
    b_dense = jnp.concatenate([jnp.tile(b_gates[:Ch], W),
                               jnp.tile(b_gates[Ch:], W),
                               jnp.tile(b_can, W)]).reshape(1, 3 * WCh)
    b_dense = b_dense.astype(jnp.float32)

    # --- VMEM budget: banded weights scale as W^2 (v7x has 64 MiB physical) --
    bpe = jnp.dtype(cdt).itemsize
    w_bytes = (wx_big.size + wh_big.size + wc_big.size) * bpe
    act_bytes = Mp * (Lx + Lh) * 4 + M * WCh * 4
    est = 2 * (w_bytes + act_bytes + b_dense.size * 4) + Mp * WCh * 4
    if est > 48 * 2 ** 20:
        raise ValueError(
            f"banded-weight ConvGRU needs ~{est / 2**20:.1f} MiB VMEM; tile W "
            "or switch to an im2col formulation for this spatial size")
    vmem_limit = min(max(est + (8 << 20), 32 << 20), 48 << 20)

    kernel = functools.partial(conv_gru_kernel, M=M, K=K, pad=pad, WCh=WCh,
                               cdt=cdt)

    out = pl.pallas_call(
        kernel,
        out_shape=jax.ShapeDtypeStruct((S, M, WCh), jnp.float32),
        grid_spec=pltpu.PrefetchScalarGridSpec(
            num_scalar_prefetch=0,
            grid=(S,),
            in_specs=[
                pl.BlockSpec((1, Mp, Lx), lambda s: (s, 0, 0)),
                pl.BlockSpec((1, Mp, Lh), lambda s: (s, 0, 0)),
                pl.BlockSpec((K, Lx, 3 * WCh), lambda s: (0, 0, 0)),
                pl.BlockSpec((K, Lh, 2 * WCh), lambda s: (0, 0, 0)),
                pl.BlockSpec((1, 3 * WCh), lambda s: (0, 0)),
                pl.BlockSpec((K, Lh, WCh), lambda s: (0, 0, 0)),
            ],
            out_specs=pl.BlockSpec((1, M, WCh), lambda s: (s, 0, 0)),
            scratch_shapes=[pltpu.VMEM((Mp, WCh), jnp.float32)],
        ),
        compiler_params=pltpu.CompilerParams(
            dimension_semantics=("parallel",),
            vmem_limit_bytes=vmem_limit),
    )(xp, hp, wx_big.astype(cdt), wh_big.astype(cdt), b_dense,
      wc_big.astype(cdt))

    # kernel output lives in the H-padded frame; drop the border rows
    return out.reshape(B, Hp, W, Ch)[:, pad:pad + H]


# ----------------------------- pure-JAX reference -----------------------------
def _conv2d_nhwc(x, w, b, pad):
    out = lax.conv_general_dilated(
        x, w, window_strides=(1, 1),
        padding=((pad, pad), (pad, pad)),
        dimension_numbers=("NHWC", "HWIO", "NHWC"))
    return out + b.reshape(1, 1, 1, -1)


def ref_forward(x, h, w_gates, b_gates, w_can, b_can, *, pad, Ch,
                operand_dtype=None):
    """Reference; if operand_dtype is set, matmul operands are quantized at the
    same points the kernel quantizes them (mixed-precision MXU emulation)."""
    f32 = jnp.float32
    if operand_dtype is None:
        q = lambda a: a.astype(f32)
    else:
        q = lambda a: a.astype(operand_dtype).astype(f32)
    x32, h32 = x.astype(f32), h.astype(f32)
    cc = _conv2d_nhwc(jnp.concatenate([q(x), q(h)], axis=-1), q(w_gates),
                      b_gates.astype(f32), pad)
    reset = jax.nn.sigmoid(cc[..., :Ch])
    update = jax.nn.sigmoid(cc[..., Ch:])
    cnm = jnp.tanh(_conv2d_nhwc(jnp.concatenate([q(x), q(reset * h32)], axis=-1),
                                q(w_can), b_can.astype(f32), pad))
    return (1.0 - update) * h32 + update * cnm


if __name__ == "__main__":
    # Module config: inp_channels=4, hidden_channels=8, kernel=3, stride=1,
    # padding=1, dilation=1, bias=True.  Batch=2, spatial 16x16 (NHWC here).
    B, H, W = 2, 16, 16
    Cin, Ch, K, pad = 4, 8, 3, 1
    cdt = jnp.bfloat16   # MXU operand dtype (weights stored in bf16 too)

    key = jax.random.PRNGKey(0)
    kx, kh, kwg, kbg, kwc, kbc = jax.random.split(key, 6)

    x = jax.random.normal(kx, (B, H, W, Cin), jnp.float32)
    h_cur = jax.random.normal(kh, (B, H, W, Ch), jnp.float32)

    w_gates = 0.1 * jax.random.normal(kwg, (K, K, Cin + Ch, 2 * Ch), jnp.float32)
    b_gates = 0.1 * jax.random.normal(kbg, (2 * Ch,), jnp.float32)
    w_can = 0.1 * jax.random.normal(kwc, (K, K, Cin + Ch, Ch), jnp.float32)
    b_can = 0.1 * jax.random.normal(kbc, (Ch,), jnp.float32)

    h_next = conv_gru_block(x, h_cur, w_gates, b_gates, w_can, b_can,
                            K=K, pad=pad, compute_dtype=cdt)
    h_next = jax.block_until_ready(h_next)

    h_ref = ref_forward(x, h_cur, w_gates, b_gates, w_can, b_can,
                        pad=pad, Ch=Ch, operand_dtype=cdt)
    assert h_next.shape == (B, H, W, Ch)
    max_err = float(jnp.max(jnp.abs(h_next - h_ref)))
    assert jnp.allclose(h_next, h_ref, atol=1e-2, rtol=1e-2), max_err

    print("KERNEL_OK")
</pallas_src>

<mosaic_0001>
module attributes {stable_mosaic.version = 11 : i64} {
  func.func @conv_gru_kernel(%arg0: i32, %arg1: memref<1x20x128xf32, #tpu.memory_space<vmem>>, %arg2: memref<1x20x128xf32, #tpu.memory_space<vmem>>, %arg3: memref<3x128x384xbf16, #tpu.memory_space<vmem>>, %arg4: memref<3x128x256xbf16, #tpu.memory_space<vmem>>, %arg5: memref<1x384xf32, #tpu.memory_space<vmem>>, %arg6: memref<3x128x128xbf16, #tpu.memory_space<vmem>>, %arg7: memref<1x18x128xf32, #tpu.memory_space<vmem>>, %arg8: memref<20x128xf32, #tpu.memory_space<vmem>>) attributes {dimension_semantics = [#tpu.dimension_semantics<parallel>], iteration_bounds = array<i64: 2>, scalar_prefetch = 0 : i64, scratch_operands = 1 : i64, tpu.core_type = #tpu.core_type<tc>, window_params = [{transform_indices = @transform_0, window_bounds = array<i64: 1, 20, 128>}, {transform_indices = @transform_1, window_bounds = array<i64: 1, 20, 128>}, {pipeline_mode = #tpu.pipeline_mode<synchronous>, transform_indices = @transform_2, window_bounds = array<i64: 3, 128, 384>}, {pipeline_mode = #tpu.pipeline_mode<synchronous>, transform_indices = @transform_3, window_bounds = array<i64: 3, 128, 256>}, {pipeline_mode = #tpu.pipeline_mode<synchronous>, transform_indices = @transform_4, window_bounds = array<i64: 1, 384>}, {pipeline_mode = #tpu.pipeline_mode<synchronous>, transform_indices = @transform_5, window_bounds = array<i64: 3, 128, 128>}, {transform_indices = @transform_6, window_bounds = array<i64: 1, 18, 128>}]} {
    %cst = arith.constant 0.000000e+00 : f32
    %0 = vector.broadcast %cst : f32 to vector<18x384xf32>
    %cst_0 = arith.constant 0.000000e+00 : f32
    %1 = vector.broadcast %cst_0 : f32 to vector<18x256xf32>
    %c0 = arith.constant 0 : index
    %c0_1 = arith.constant 0 : index
    %c0_2 = arith.constant 0 : index
    %2 = vector.load %arg1[%c0, %c0_1, %c0_2] : memref<1x20x128xf32, #tpu.memory_space<vmem>>, vector<1x18x128xf32>
    %3 = vector.shape_cast %2 : vector<1x18x128xf32> to vector<18x128xf32>
    %4 = arith.truncf %3 : vector<18x128xf32> to vector<18x128xbf16>
    %c0_3 = arith.constant 0 : index
    %c0_4 = arith.constant 0 : index
    %c0_5 = arith.constant 0 : index
    %5 = vector.load %arg2[%c0_3, %c0_4, %c0_5] : memref<1x20x128xf32, #tpu.memory_space<vmem>>, vector<1x18x128xf32>
    %6 = vector.shape_cast %5 : vector<1x18x128xf32> to vector<18x128xf32>
    %7 = arith.truncf %6 : vector<18x128xf32> to vector<18x128xbf16>
    %c0_6 = arith.constant 0 : index
    %c0_7 = arith.constant 0 : index
    %c0_8 = arith.constant 0 : index
    %8 = vector.load %arg3[%c0_6, %c0_7, %c0_8] : memref<3x128x384xbf16, #tpu.memory_space<vmem>>, vector<1x128x384xbf16>
    %9 = vector.shape_cast %8 : vector<1x128x384xbf16> to vector<128x384xbf16>
    %cst_9 = arith.constant dense<0.000000e+00> : vector<18x384xf32>
    %10 = tpu.matmul %4, %9, %cst_9 {dimension_numbers = #tpu.dot_dimension_numbers<[1], [0], [0], [1], [0, 0, 1, 1], [], []>} : vector<18x128xbf16>, vector<128x384xbf16>, vector<18x384xf32> -> vector<18x384xf32>
    %11 = arith.addf %0, %10 : vector<18x384xf32>
    %c0_10 = arith.constant 0 : index
    %c0_11 = arith.constant 0 : index
    %c0_12 = arith.constant 0 : index
    %12 = vector.load %arg4[%c0_10, %c0_11, %c0_12] : memref<3x128x256xbf16, #tpu.memory_space<vmem>>, vector<1x128x256xbf16>
    %13 = vector.shape_cast %12 : vector<1x128x256xbf16> to vector<128x256xbf16>
    %cst_13 = arith.constant dense<0.000000e+00> : vector<18x256xf32>
    %14 = tpu.matmul %7, %13, %cst_13 {dimension_numbers = #tpu.dot_dimension_numbers<[1], [0], [0], [1], [0, 0, 1, 1], [], []>} : vector<18x128xbf16>, vector<128x256xbf16>, vector<18x256xf32> -> vector<18x256xf32>
    %15 = arith.addf %1, %14 : vector<18x256xf32>
    %c0_14 = arith.constant 0 : index
    %c1 = arith.constant 1 : index
    %c0_15 = arith.constant 0 : index
    %16 = vector.load %arg1[%c0_14, %c1, %c0_15] : memref<1x20x128xf32, #tpu.memory_space<vmem>>, vector<1x18x128xf32>
    %17 = vector.shape_cast %16 : vector<1x18x128xf32> to vector<18x128xf32>
    %18 = arith.truncf %17 : vector<18x128xf32> to vector<18x128xbf16>
    %c0_16 = arith.constant 0 : index
    %c1_17 = arith.constant 1 : index
    %c0_18 = arith.constant 0 : index
    %19 = vector.load %arg2[%c0_16, %c1_17, %c0_18] : memref<1x20x128xf32, #tpu.memory_space<vmem>>, vector<1x18x128xf32>
    %20 = vector.shape_cast %19 : vector<1x18x128xf32> to vector<18x128xf32>
    %21 = arith.truncf %20 : vector<18x128xf32> to vector<18x128xbf16>
    %c1_19 = arith.constant 1 : index
    %c0_20 = arith.constant 0 : index
    %c0_21 = arith.constant 0 : index
    %22 = vector.load %arg3[%c1_19, %c0_20, %c0_21] : memref<3x128x384xbf16, #tpu.memory_space<vmem>>, vector<1x128x384xbf16>
    %23 = vector.shape_cast %22 : vector<1x128x384xbf16> to vector<128x384xbf16>
    %cst_22 = arith.constant dense<0.000000e+00> : vector<18x384xf32>
    %24 = tpu.matmul %18, %23, %cst_22 {dimension_numbers = #tpu.dot_dimension_numbers<[1], [0], [0], [1], [0, 0, 1, 1], [], []>} : vector<18x128xbf16>, vector<128x384xbf16>, vector<18x384xf32> -> vector<18x384xf32>
    %25 = arith.addf %11, %24 : vector<18x384xf32>
    %c1_23 = arith.constant 1 : index
    %c0_24 = arith.constant 0 : index
    %c0_25 = arith.constant 0 : index
    %26 = vector.load %arg4[%c1_23, %c0_24, %c0_25] : memref<3x128x256xbf16, #tpu.memory_space<vmem>>, vector<1x128x256xbf16>
    %27 = vector.shape_cast %26 : vector<1x128x256xbf16> to vector<128x256xbf16>
    %cst_26 = arith.constant dense<0.000000e+00> : vector<18x256xf32>
    %28 = tpu.matmul %21, %27, %cst_26 {dimension_numbers = #tpu.dot_dimension_numbers<[1], [0], [0], [1], [0, 0, 1, 1], [], []>} : vector<18x128xbf16>, vector<128x256xbf16>, vector<18x256xf32> -> vector<18x256xf32>
    %29 = arith.addf %15, %28 : vector<18x256xf32>
    %c0_27 = arith.constant 0 : index
    %c2 = arith.constant 2 : index
    %c0_28 = arith.constant 0 : index
    %30 = vector.load %arg1[%c0_27, %c2, %c0_28] : memref<1x20x128xf32, #tpu.memory_space<vmem>>, vector<1x18x128xf32>
    %31 = vector.shape_cast %30 : vector<1x18x128xf32> to vector<18x128xf32>
    %32 = arith.truncf %31 : vector<18x128xf32> to vector<18x128xbf16>
    %c0_29 = arith.constant 0 : index
    %c2_30 = arith.constant 2 : index
    %c0_31 = arith.constant 0 : index
    %33 = vector.load %arg2[%c0_29, %c2_30, %c0_31] : memref<1x20x128xf32, #tpu.memory_space<vmem>>, vector<1x18x128xf32>
    %34 = vector.shape_cast %33 : vector<1x18x128xf32> to vector<18x128xf32>
    %35 = arith.truncf %34 : vector<18x128xf32> to vector<18x128xbf16>
    %c2_32 = arith.constant 2 : index
    %c0_33 = arith.constant 0 : index
    %c0_34 = arith.constant 0 : index
    %36 = vector.load %arg3[%c2_32, %c0_33, %c0_34] : memref<3x128x384xbf16, #tpu.memory_space<vmem>>, vector<1x128x384xbf16>
    %37 = vector.shape_cast %36 : vector<1x128x384xbf16> to vector<128x384xbf16>
    %cst_35 = arith.constant dense<0.000000e+00> : vector<18x384xf32>
    %38 = tpu.matmul %32, %37, %cst_35 {dimension_numbers = #tpu.dot_dimension_numbers<[1], [0], [0], [1], [0, 0, 1, 1], [], []>} : vector<18x128xbf16>, vector<128x384xbf16>, vector<18x384xf32> -> vector<18x384xf32>
    %39 = arith.addf %25, %38 : vector<18x384xf32>
    %c2_36 = arith.constant 2 : index
    %c0_37 = arith.constant 0 : index
    %c0_38 = arith.constant 0 : index
    %40 = vector.load %arg4[%c2_36, %c0_37, %c0_38] : memref<3x128x256xbf16, #tpu.memory_space<vmem>>, vector<1x128x256xbf16>
    %41 = vector.shape_cast %40 : vector<1x128x256xbf16> to vector<128x256xbf16>
    %cst_39 = arith.constant dense<0.000000e+00> : vector<18x256xf32>
    %42 = tpu.matmul %35, %41, %cst_39 {dimension_numbers = #tpu.dot_dimension_numbers<[1], [0], [0], [1], [0, 0, 1, 1], [], []>} : vector<18x128xbf16>, vector<128x256xbf16>, vector<18x256xf32> -> vector<18x256xf32>
    %43 = arith.addf %29, %42 : vector<18x256xf32>
    %c0_40 = arith.constant 0 : index
    %c0_41 = arith.constant 0 : index
    %44 = vector.load %arg5[%c0_40, %c0_41] : memref<1x384xf32, #tpu.memory_space<vmem>>, vector<1x384xf32>
    %45 = vector.broadcast %44 : vector<1x384xf32> to vector<18x384xf32>
    %46 = arith.addf %39, %45 : vector<18x384xf32>
    %47 = vector.extract_strided_slice %46 {offsets = [0, 0], sizes = [18, 256], strides = [1, 1]} : vector<18x384xf32> to vector<18x256xf32>
    %48 = arith.addf %47, %43 : vector<18x256xf32>
    %49 = vector.extract_strided_slice %48 {offsets = [0, 0], sizes = [18, 128], strides = [1, 1]} : vector<18x256xf32> to vector<18x128xf32>
    %50 = arith.negf %49 : vector<18x128xf32>
    %51 = math.exp %50 : vector<18x128xf32>
    %cst_42 = arith.constant 1.000000e+00 : f32
    %52 = vector.broadcast %cst_42 : f32 to vector<18x128xf32>
    %53 = arith.addf %52, %51 : vector<18x128xf32>
    %54 = arith.divf %52, %53 : vector<18x128xf32>
    %55 = vector.extract_strided_slice %48 {offsets = [0, 128], sizes = [18, 128], strides = [1, 1]} : vector<18x256xf32> to vector<18x128xf32>
    %56 = arith.negf %55 : vector<18x128xf32>
    %57 = math.exp %56 : vector<18x128xf32>
    %cst_43 = arith.constant 1.000000e+00 : f32
    %58 = vector.broadcast %cst_43 : f32 to vector<18x128xf32>
    %59 = arith.addf %58, %57 : vector<18x128xf32>
    %60 = arith.divf %58, %59 : vector<18x128xf32>
    %61 = vector.extract_strided_slice %46 {offsets = [0, 256], sizes = [18, 128], strides = [1, 1]} : vector<18x384xf32> to vector<18x128xf32>
    %c0_44 = arith.constant 0 : index
    %c1_45 = arith.constant 1 : index
    %c0_46 = arith.constant 0 : index
    %62 = vector.load %arg2[%c0_44, %c1_45, %c0_46] : memref<1x20x128xf32, #tpu.memory_space<vmem>>, vector<1x18x128xf32>
    %63 = vector.shape_cast %62 : vector<1x18x128xf32> to vector<18x128xf32>
    %cst_47 = arith.constant 0.000000e+00 : f32
    %64 = vector.broadcast %cst_47 : f32 to vector<1x128xf32>
    %c0_48 = arith.constant 0 : index
    %c0_49 = arith.constant 0 : index
    %65 = vector.load %arg8[%c0_48, %c0_49] : memref<20x128xf32, #tpu.memory_space<vmem>>, vector<1x128xf32>
    tpu.vector_store %arg8[%c0_48, %c0_49], %64 {strides = array<i32>} : memref<20x128xf32, #tpu.memory_space<vmem>>, vector<1x128xf32>,
    %cst_50 = arith.constant 0.000000e+00 : f32
    %66 = vector.broadcast %cst_50 : f32 to vector<1x128xf32>
    %c19 = arith.constant 19 : index
    %c0_51 = arith.constant 0 : index
    %67 = vector.load %arg8[%c19, %c0_51] : memref<20x128xf32, #tpu.memory_space<vmem>>, vector<1x128xf32>
    tpu.vector_store %arg8[%c19, %c0_51], %66 {strides = array<i32>} : memref<20x128xf32, #tpu.memory_space<vmem>>, vector<1x128xf32>,
    %68 = arith.mulf %54, %63 : vector<18x128xf32>
    %c1_52 = arith.constant 1 : index
    %c0_53 = arith.constant 0 : index
    %69 = vector.load %arg8[%c1_52, %c0_53] : memref<20x128xf32, #tpu.memory_space<vmem>>, vector<18x128xf32>
    tpu.vector_store %arg8[%c1_52, %c0_53], %68 {strides = array<i32>} : memref<20x128xf32, #tpu.memory_space<vmem>>, vector<18x128xf32>,
    %c0_54 = arith.constant 0 : index
    %c0_55 = arith.constant 0 : index
    %70 = vector.load %arg8[%c0_54, %c0_55] : memref<20x128xf32, #tpu.memory_space<vmem>>, vector<18x128xf32>
    %71 = arith.truncf %70 : vector<18x128xf32> to vector<18x128xbf16>
    %c0_56 = arith.constant 0 : index
    %c0_57 = arith.constant 0 : index
    %c0_58 = arith.constant 0 : index
    %72 = vector.load %arg6[%c0_56, %c0_57, %c0_58] : memref<3x128x128xbf16, #tpu.memory_space<vmem>>, vector<1x128x128xbf16>
    %73 = vector.shape_cast %72 : vector<1x128x128xbf16> to vector<128x128xbf16>
    %cst_59 = arith.constant dense<0.000000e+00> : vector<18x128xf32>
    %74 = tpu.matmul %71, %73, %cst_59 {dimension_numbers = #tpu.dot_dimension_numbers<[1], [0], [0], [1], [0, 0, 1, 1], [], []>} : vector<18x128xbf16>, vector<128x128xbf16>, vector<18x128xf32> -> vector<18x128xf32>
    %75 = arith.addf %61, %74 : vector<18x128xf32>
    %c1_60 = arith.constant 1 : index
    %c0_61 = arith.constant 0 : index
    %76 = vector.load %arg8[%c1_60, %c0_61] : memref<20x128xf32, #tpu.memory_space<vmem>>, vector<18x128xf32>
    %77 = arith.truncf %76 : vector<18x128xf32> to vector<18x128xbf16>
    %c1_62 = arith.constant 1 : index
    %c0_63 = arith.constant 0 : index
    %c0_64 = arith.constant 0 : index
    %78 = vector.load %arg6[%c1_62, %c0_63, %c0_64] : memref<3x128x128xbf16, #tpu.memory_space<vmem>>, vector<1x128x128xbf16>
    %79 = vector.shape_cast %78 : vector<1x128x128xbf16> to vector<128x128xbf16>
    %cst_65 = arith.constant dense<0.000000e+00> : vector<18x128xf32>
    %80 = tpu.matmul %77, %79, %cst_65 {dimension_numbers = #tpu.dot_dimension_numbers<[1], [0], [0], [1], [0, 0, 1, 1], [], []>} : vector<18x128xbf16>, vector<128x128xbf16>, vector<18x128xf32> -> vector<18x128xf32>
    %81 = arith.addf %75, %80 : vector<18x128xf32>
    %c2_66 = arith.constant 2 : index
    %c0_67 = arith.constant 0 : index
    %82 = vector.load %arg8[%c2_66, %c0_67] : memref<20x128xf32, #tpu.memory_space<vmem>>, vector<18x128xf32>
    %83 = arith.truncf %82 : vector<18x128xf32> to vector<18x128xbf16>
    %c2_68 = arith.constant 2 : index
    %c0_69 = arith.constant 0 : index
    %c0_70 = arith.constant 0 : index
    %84 = vector.load %arg6[%c2_68, %c0_69, %c0_70] : memref<3x128x128xbf16, #tpu.memory_space<vmem>>, vector<1x128x128xbf16>
    %85 = vector.shape_cast %84 : vector<1x128x128xbf16> to vector<128x128xbf16>
    %cst_71 = arith.constant dense<0.000000e+00> : vector<18x128xf32>
    %86 = tpu.matmul %83, %85, %cst_71 {dimension_numbers = #tpu.dot_dimension_numbers<[1], [0], [0], [1], [0, 0, 1, 1], [], []>} : vector<18x128xbf16>, vector<128x128xbf16>, vector<18x128xf32> -> vector<18x128xf32>
    %87 = arith.addf %81, %86 : vector<18x128xf32>
    %88 = math.tanh %87 : vector<18x128xf32>
    %cst_72 = arith.constant 1.000000e+00 : f32
    %89 = vector.broadcast %cst_72 : f32 to vector<18x128xf32>
    %90 = arith.subf %89, %60 : vector<18x128xf32>
    %91 = arith.mulf %90, %63 : vector<18x128xf32>
    %92 = arith.mulf %60, %88 : vector<18x128xf32>
    %93 = arith.addf %91, %92 : vector<18x128xf32>
    %c0_73 = arith.constant 0 : index
    %c0_74 = arith.constant 0 : index
    %c0_75 = arith.constant 0 : index
    %94 = vector.load %arg7[%c0_73, %c0_74, %c0_75] : memref<1x18x128xf32, #tpu.memory_space<vmem>>, vector<1x18x128xf32>
    %95 = vector.shape_cast %94 : vector<1x18x128xf32> to vector<18x128xf32>
    %96 = vector.shape_cast %93 : vector<18x128xf32> to vector<1x18x128xf32>
    tpu.vector_store %arg7[%c0_73, %c0_74, %c0_75], %96 {strides = array<i32>} : memref<1x18x128xf32, #tpu.memory_space<vmem>>, vector<1x18x128xf32>,
    return
  }
  func.func @transform_0(%arg0: i32) -> (i32, i32, i32) {
    %c0_i32 = arith.constant 0 : i32
    %c0_i32_0 = arith.constant 0 : i32
    %c0_i32_1 = arith.constant 0 : i32
    return %arg0, %c0_i32, %c0_i32_0 : i32, i32, i32
  }
  func.func @transform_1(%arg0: i32) -> (i32, i32, i32) {
    %c0_i32 = arith.constant 0 : i32
    %c0_i32_0 = arith.constant 0 : i32
    %c0_i32_1 = arith.constant 0 : i32
    return %arg0, %c0_i32, %c0_i32_0 : i32, i32, i32
  }
  func.func @transform_2(%arg0: i32) -> (i32, i32, i32) {
    %c0_i32 = arith.constant 0 : i32
    %c0_i32_0 = arith.constant 0 : i32
    %c0_i32_1 = arith.constant 0 : i32
    %c0_i32_2 = arith.constant 0 : i32
    return %c0_i32, %c0_i32_0, %c0_i32_1 : i32, i32, i32
  }
  func.func @transform_3(%arg0: i32) -> (i32, i32, i32) {
    %c0_i32 = arith.constant 0 : i32
    %c0_i32_0 = arith.constant 0 : i32
    %c0_i32_1 = arith.constant 0 : i32
    %c0_i32_2 = arith.constant 0 : i32
    return %c0_i32, %c0_i32_0, %c0_i32_1 : i32, i32, i32
  }
  func.func @transform_4(%arg0: i32) -> (i32, i32) {
    %c0_i32 = arith.constant 0 : i32
    %c0_i32_0 = arith.constant 0 : i32
    %c0_i32_1 = arith.constant 0 : i32
    return %c0_i32, %c0_i32_0 : i32, i32
  }
  func.func @transform_5(%arg0: i32) -> (i32, i32, i32) {
    %c0_i32 = arith.constant 0 : i32
    %c0_i32_0 = arith.constant 0 : i32
    %c0_i32_1 = arith.constant 0 : i32
    %c0_i32_2 = arith.constant 0 : i32
    return %c0_i32, %c0_i32_0, %c0_i32_1 : i32, i32, i32
  }
  func.func @transform_6(%arg0: i32) -> (i32, i32, i32) {
    %c0_i32 = arith.constant 0 : i32
    %c0_i32_0 = arith.constant 0 : i32
    %c0_i32_1 = arith.constant 0 : i32
    return %arg0, %c0_i32, %c0_i32_0 : i32, i32, i32
  }
}

</mosaic_0001>

<llo_original>
// kernel: tpu_custom_call.1
$region0: #{tpu_custom_call.1}
  #allocation0 [shape = 'u32[]', space=smem, size = 0x4, offset = 0x4, fixed_abs, tag = 'smem constant byte address 0x4 - core index']
  #allocation1 [shape = 'u32[144,128]{1,0:T(1,128)}', space=vmem, size = 0x12000, scoped, tag = 'internal scratch']
  #allocation2 [shape = 'f32[20,128]{1,0:T(8,128)}', space=vmem, size = 0x3000, scoped, tag = 'scratch operand']
  %s0 = inlined_call_operand.vmem [shape: f32[2,20,128], index: 0, kind: input, shape index: {}]
  %s1 = inlined_call_operand.vmem [shape: f32[2,20,128], index: 1, kind: input, shape index: {}]
  %s2 = inlined_call_operand.hbm [shape: bf16[3,128,384], index: 2, kind: input, shape index: {}]
  %s3 = inlined_call_operand.hbm [shape: bf16[3,128,256], index: 3, kind: input, shape index: {}]
  %s4 = inlined_call_operand.vmem [shape: f32[1,384], index: 4, kind: input, shape index: {}]
  %s5 = inlined_call_operand.hbm [shape: bf16[3,128,128], index: 5, kind: input, shape index: {}]
  %s6 = inlined_call_operand.vmem [shape: f32[2,18,128], index: 6, kind: output, shape index: {}]
  %s7 = sld [smem:[#allocation0]]
  $region69: #{tpu_custom_call.1} parent=0
    _
  %s9 = ssub.s32 1, %s7
  %s10 = scalar_select 0, %s9, %s7
  $region1: #{tpu_custom_call.1} parent=0
    #allocation3 [shape = 'u8[294912]{0}', space=vmem, size = 0x48000, scoped, tag = 'input window, operand 2, single buffered']
    #allocation4 [shape = 's32[2]{0}', space=sflag, size = 0x8, scoped, tag = 'scoped memory for tpu_custom_call.1']
    #allocation5 [shape = 'u8[196608]{0}', space=vmem, size = 0x30000, scoped, tag = 'input window, operand 3, single buffered']
    #allocation6 [shape = 's32[1]{0}', space=sflag, size = 0x4, scoped, tag = 'scoped memory for tpu_custom_call.1']
    #allocation7 [shape = 'u8[98304]{0}', space=vmem, size = 0x18000, scoped, tag = 'input window, operand 5, single buffered']
    %11 = vsyncpa [#allocation4], 0
    %12 = vsyncpa [#allocation6], 0
    loop: start=0, step=1, limit=4
    $region2: #{tpu_custom_call.1} parent=1 // loop_pre_header
      _
    $region3: #{tpu_custom_call.1} parent=1 // loop_header
      %s14 = sphi 0, %s18
      %p15 = scmp.ge.s32.totalorder %s14, 4
      %s24 = sphi 0, %s26
      %s27 = sphi 0, %s24
      %s28 = sphi 0, %s27
      %s44 = sphi 0, %s28
      %s50 = sphi 0, %s52
      %s53 = sphi 0, %s50
      %s54 = sphi 0, %s53
      %s70 = sphi 0, %s54
      %s74 = sphi 0, %s74
      %s76 = sphi 0, %s74
      %s77 = sphi 0, %s76
      %s91 = sphi 0, %s77
      %s95 = sphi 0, %s95
      %s97 = sphi 0, %s95
      %s98 = sphi 0, %s97
      %s112 = sphi 0, %s98
      %s116 = sphi 0, %s116
      %s118 = sphi 0, %s116
      %s119 = sphi 0, %s118
      %s133 = sphi 0, %s119
      %s137 = sphi 0, %s137
      %s139 = sphi 0, %s137
      %s140 = sphi 0, %s139
      %s154 = sphi 0, %s140
      %s160 = sphi 0, %s162
      %s163 = sphi 0, %s160
      %s164 = sphi 0, %s163
      %s180 = sphi 0, %s164
    $region4: #{tpu_custom_call.1} parent=1 // loop_header_branch
      %17 = sbr.rel (%p15) target = $region8
    $region5: #{tpu_custom_call.1} parent=1 // loop_body
      %s19 = ssub.s32 %s14, 1
      %s20 = ssub.s32 %s14, 2
      %s21 = sadd.s32 %s14, 1
      %s22 = ssub.s32 %s14, %s21
      %p23 = scmp.eq.s32.totalorder %s22, 0
      %s25 = sadd.s32 %s24, 1
      %s26 = scalar_select %p23, %s24, %s25
      %p29 = pneg %p23
      %p30 = scmp.eq.s32.totalorder %s14, 1
      %p31 = por %p29, %p30
      %p32 = scmp.ne.s32.totalorder %s24, %s27
      %p33 = scmp.eq.s32.totalorder %s14, 0
      %p34 = por %p32, %p33
      %p35 = scmp.ne.s32.totalorder %s24, %s27
      %p36 = scmp.eq.s32.totalorder %s19, 1
      %p37 = por %p35, %p36
      %p38 = scmp.ne.s32.totalorder %s27, %s28
      %p39 = scmp.eq.s32.totalorder %s19, 0
      %p40 = por %p38, %p39
      %p41 = scmp.ne.s32.totalorder %s27, %s28
      %p42 = scmp.eq.s32.totalorder %s20, 1
      %p43 = por %p41, %p42
      %p45 = scmp.ne.s32.totalorder %s28, %s44
      %p46 = scmp.eq.s32.totalorder %s20, 0
      %p47 = por %p45, %p46
      %s48 = ssub.s32 %s14, %s21
      %p49 = scmp.eq.s32.totalorder %s48, 0
      %s51 = sadd.s32 %s50, 1
      %s52 = scalar_select %p49, %s50, %s51
      %p55 = pneg %p49
      %p56 = scmp.eq.s32.totalorder %s14, 1
      %p57 = por %p55, %p56
      %p58 = scmp.ne.s32.totalorder %s50, %s53
      %p59 = scmp.eq.s32.totalorder %s14, 0
      %p60 = por %p58, %p59
      %p61 = scmp.ne.s32.totalorder %s50, %s53
      %p62 = scmp.eq.s32.totalorder %s19, 1
      %p63 = por %p61, %p62
      %p64 = scmp.ne.s32.totalorder %s53, %s54
      %p65 = scmp.eq.s32.totalorder %s19, 0
      %p66 = por %p64, %p65
      %p67 = scmp.ne.s32.totalorder %s53, %s54
      %p68 = scmp.eq.s32.totalorder %s20, 1
      %p69 = por %p67, %p68
      %p71 = scmp.ne.s32.totalorder %s54, %s70
      %p72 = scmp.eq.s32.totalorder %s20, 0
      %p73 = por %p71, %p72
      %s75 = sadd.s32 %s74, 1
      %p78 = scmp.eq.s32.totalorder %s14, 1
      %p79 = scmp.ne.s32.totalorder %s74, %s76
      %p80 = scmp.eq.s32.totalorder %s14, 0
      %p81 = por %p79, %p80
      %p82 = scmp.ne.s32.totalorder %s74, %s76
      %p83 = scmp.eq.s32.totalorder %s19, 1
      %p84 = por %p82, %p83
      %p85 = scmp.ne.s32.totalorder %s76, %s77
      %p86 = scmp.eq.s32.totalorder %s19, 0
      %p87 = por %p85, %p86
      %p88 = scmp.ne.s32.totalorder %s76, %s77
      %p89 = scmp.eq.s32.totalorder %s20, 1
      %p90 = por %p88, %p89
      %p92 = scmp.ne.s32.totalorder %s77, %s91
      %p93 = scmp.eq.s32.totalorder %s20, 0
      %p94 = por %p92, %p93
      %s96 = sadd.s32 %s95, 1
      %p99 = scmp.eq.s32.totalorder %s14, 1
      %p100 = scmp.ne.s32.totalorder %s95, %s97
      %p101 = scmp.eq.s32.totalorder %s14, 0
      %p102 = por %p100, %p101
      %p103 = scmp.ne.s32.totalorder %s95, %s97
      %p104 = scmp.eq.s32.totalorder %s19, 1
      %p105 = por %p103, %p104
      %p106 = scmp.ne.s32.totalorder %s97, %s98
      %p107 = scmp.eq.s32.totalorder %s19, 0
      %p108 = por %p106, %p107
      %p109 = scmp.ne.s32.totalorder %s97, %s98
      %p110 = scmp.eq.s32.totalorder %s20, 1
      %p111 = por %p109, %p110
      %p113 = scmp.ne.s32.totalorder %s98, %s112
      %p114 = scmp.eq.s32.totalorder %s20, 0
      %p115 = por %p113, %p114
      %s117 = sadd.s32 %s116, 1
      %p120 = scmp.eq.s32.totalorder %s14, 1
      %p121 = scmp.ne.s32.totalorder %s116, %s118
      %p122 = scmp.eq.s32.totalorder %s14, 0
      %p123 = por %p121, %p122
      %p124 = scmp.ne.s32.totalorder %s116, %s118
      %p125 = scmp.eq.s32.totalorder %s19, 1
      %p126 = por %p124, %p125
      %p127 = scmp.ne.s32.totalorder %s118, %s119
      %p128 = scmp.eq.s32.totalorder %s19, 0
      %p129 = por %p127, %p128
      %p130 = scmp.ne.s32.totalorder %s118, %s119
      %p131 = scmp.eq.s32.totalorder %s20, 1
      %p132 = por %p130, %p131
      %p134 = scmp.ne.s32.totalorder %s119, %s133
      %p135 = scmp.eq.s32.totalorder %s20, 0
      %p136 = por %p134, %p135
      %s138 = sadd.s32 %s137, 1
      %p141 = scmp.eq.s32.totalorder %s14, 1
      %p142 = scmp.ne.s32.totalorder %s137, %s139
      %p143 = scmp.eq.s32.totalorder %s14, 0
      %p144 = por %p142, %p143
      %p145 = scmp.ne.s32.totalorder %s137, %s139
      %p146 = scmp.eq.s32.totalorder %s19, 1
      %p147 = por %p145, %p146
      %p148 = scmp.ne.s32.totalorder %s139, %s140
      %p149 = scmp.eq.s32.totalorder %s19, 0
      %p150 = por %p148, %p149
      %p151 = scmp.ne.s32.totalorder %s139, %s140
      %p152 = scmp.eq.s32.totalorder %s20, 1
      %p153 = por %p151, %p152
      %p155 = scmp.ne.s32.totalorder %s140, %s154
      %p156 = scmp.eq.s32.totalorder %s20, 0
      %p157 = por %p155, %p156
      %s158 = ssub.s32 %s14, %s21
      %p159 = scmp.eq.s32.totalorder %s158, 0
      %s161 = sadd.s32 %s160, 1
      %s162 = scalar_select %p159, %s160, %s161
      %p165 = pneg %p159
      %p166 = scmp.eq.s32.totalorder %s14, 1
      %p167 = por %p165, %p166
      %p168 = scmp.ne.s32.totalorder %s160, %s163
      %p169 = scmp.eq.s32.totalorder %s14, 0
      %p170 = por %p168, %p169
      %p171 = scmp.ne.s32.totalorder %s160, %s163
      %p172 = scmp.eq.s32.totalorder %s19, 1
      %p173 = por %p171, %p172
      %p174 = scmp.ne.s32.totalorder %s163, %s164
      %p175 = scmp.eq.s32.totalorder %s19, 0
      %p176 = por %p174, %p175
      %p177 = scmp.ne.s32.totalorder %s163, %s164
      %p178 = scmp.eq.s32.totalorder %s20, 1
      %p179 = por %p177, %p178
      %p181 = scmp.ne.s32.totalorder %s164, %s180
      %p182 = scmp.eq.s32.totalorder %s20, 0
      %p183 = por %p181, %p182
      %p184 = scmp.le.s32.totalorder 1, %s14
      %p185 = scmp.lt.s32.totalorder %s14, 3
      %p186 = pnand %p184, %p185
      %p187 = pneg %p186
      // Predicated region
      $region9: #{tpu_custom_call.1} parent=5 // pred_check
        _
      $region10: #{tpu_custom_call.1} parent=5 // pred_check_branch
        %189 = sbr.rel (%p186) target = $region12
      $region11: #{tpu_custom_call.1} parent=5 // pred_region
        %s190 = ssub.s32 %s14, 1
        // Predicated region
        $region13: #{tpu_custom_call.1} parent=11 // pred_check
          %p191 = pneg %p87
        $region14: #{tpu_custom_call.1} parent=11 // pred_check_branch
          %193 = sbr.rel (%p191) target = $region16
        $region15: #{tpu_custom_call.1} parent=11 // pred_region
          %s195 = ssub.s32 9216, 9216
          %196 = vsyncadd [#allocation4], %s195
          %s197 = sshll.u32 [#allocation3], 4
          %s198 = int_to_ptr.vmem [resolvable:$true] %s197
          %203 = dma.hbm_to_vmem [thread:$0]  %s2, 9216, %s198, [#allocation4], 192, 192, 12
        $region16: #{tpu_custom_call.1} parent=11 // pred_fallthru
          _
        // Predicated region
        $region17: #{tpu_custom_call.1} parent=11 // pred_check
          %p204 = pneg %p108
        $region18: #{tpu_custom_call.1} parent=11 // pred_check_branch
          %206 = sbr.rel (%p204) target = $region20
        $region19: #{tpu_custom_call.1} parent=11 // pred_region
          %s208 = ssub.s32 6144, 6144
          %209 = vsyncadd [#allocation6], %s208
          %s210 = sshll.u32 [#allocation5], 4
          %s211 = int_to_ptr.vmem [resolvable:$true] %s210
          %216 = dma.hbm_to_vmem [thread:$0]  %s3, 6144, %s211, [#allocation6], 128, 128, 8
        $region20: #{tpu_custom_call.1} parent=11 // pred_fallthru
          _
        // Predicated region
        $region21: #{tpu_custom_call.1} parent=11 // pred_check
          %p217 = pneg %p129
        $region22: #{tpu_custom_call.1} parent=11 // pred_check_branch
          %219 = sbr.rel (%p217) target = $region24
        $region23: #{tpu_custom_call.1} parent=11 // pred_region
          _
        $region24: #{tpu_custom_call.1} parent=11 // pred_fallthru
          _
        // Predicated region
        $region25: #{tpu_custom_call.1} parent=11 // pred_check
          %p220 = pneg %p150
        $region26: #{tpu_custom_call.1} parent=11 // pred_check_branch
          %222 = sbr.rel (%p220) target = $region28
        $region27: #{tpu_custom_call.1} parent=11 // pred_region
          %s224 = ssub.s32 3072, 3072
          %225 = vsyncadd [#allocation6], %s224
          %s226 = sshll.u32 [#allocation7], 4
          %s227 = int_to_ptr.vmem [resolvable:$true] %s226
          %232 = dma.hbm_to_vmem [thread:$0]  %s5, 3072, %s227, [#allocation6], 64, 64, 4
        $region28: #{tpu_custom_call.1} parent=11 // pred_fallthru
          _
      $region12: #{tpu_custom_call.1} parent=5 // pred_fallthru
        _
      %p233 = scmp.lt.s32.totalorder %s14, 2
      // Predicated region
      $region29: #{tpu_custom_call.1} parent=5 // pred_check
        %p234 = pneg %p233
      $region30: #{tpu_custom_call.1} parent=5 // pred_check_branch
        %236 = sbr.rel (%p234) target = $region32
      $region31: #{tpu_custom_call.1} parent=5 // pred_region
        // Predicated region
        $region33: #{tpu_custom_call.1} parent=31 // pred_check
          %p237 = pneg %p34
        $region34: #{tpu_custom_call.1} parent=31 // pred_check_branch
          %239 = sbr.rel (%p237) target = $region36
        $region35: #{tpu_custom_call.1} parent=31 // pred_region
          %p240 = scmp.lt.s32.totalorder %s14, 1
          %s241 = scalar_select %p240, %s14, 1
          %s242 = smul.addr %s241, 3
          %s243 = smul.addr %s242, 8
          %s244 = scalar_lea.vmem %s0, %s243
        $region36: #{tpu_custom_call.1} parent=31 // pred_fallthru
          _
        // Predicated region
        $region37: #{tpu_custom_call.1} parent=31 // pred_check
          %p245 = pneg %p60
        $region38: #{tpu_custom_call.1} parent=31 // pred_check_branch
          %247 = sbr.rel (%p245) target = $region40
        $region39: #{tpu_custom_call.1} parent=31 // pred_region
          %p248 = scmp.lt.s32.totalorder %s14, 1
          %s249 = scalar_select %p248, %s14, 1
          %s250 = smul.addr %s249, 3
          %s251 = smul.addr %s250, 8
          %s252 = scalar_lea.vmem %s1, %s251
        $region40: #{tpu_custom_call.1} parent=31 // pred_fallthru
          _
      $region32: #{tpu_custom_call.1} parent=5 // pred_fallthru
        _
      %p253 = scmp.le.s32.totalorder 1, %s14
      %p254 = scmp.lt.s32.totalorder %s14, 3
      %p255 = pnand %p253, %p254
      %p256 = pneg %p255
      // Predicated region
      $region41: #{tpu_custom_call.1} parent=5 // pred_check
        _
      $region42: #{tpu_custom_call.1} parent=5 // pred_check_branch
        %258 = sbr.rel (%p255) target = $region44
      $region43: #{tpu_custom_call.1} parent=5 // pred_region
        %s259 = ssub.s32 %s14, 1
        // Predicated region
        $region45: #{tpu_custom_call.1} parent=43 // pred_check
          %p260 = pneg %p87
        $region46: #{tpu_custom_call.1} parent=43 // pred_check_branch
          %262 = sbr.rel (%p260) target = $region48
        $region47: #{tpu_custom_call.1} parent=43 // pred_region
          %263 = dma.done [#allocation4], 9216
        $region48: #{tpu_custom_call.1} parent=43 // pred_fallthru
          _
        // Predicated region
        $region49: #{tpu_custom_call.1} parent=43 // pred_check
          %p264 = pneg %p108
        $region50: #{tpu_custom_call.1} parent=43 // pred_check_branch
          %266 = sbr.rel (%p264) target = $region52
        $region51: #{tpu_custom_call.1} parent=43 // pred_region
          %267 = dma.done [#allocation6], 6144
        $region52: #{tpu_custom_call.1} parent=43 // pred_fallthru
          _
        // Predicated region
        $region53: #{tpu_custom_call.1} parent=43 // pred_check
          %p268 = pneg %p150
        $region54: #{tpu_custom_call.1} parent=43 // pred_check_branch
          %270 = sbr.rel (%p268) target = $region56
        $region55: #{tpu_custom_call.1} parent=43 // pred_region
          %271 = dma.done [#allocation6], 3072
        $region56: #{tpu_custom_call.1} parent=43 // pred_fallthru
          _
        %p272 = scmp.lt.s32.totalorder %s19, 1
        %s273 = scalar_select %p272, %s19, 1
        %s274 = smul.addr %s273, 3
        %s275 = smul.addr %s274, 8
        %s276 = scalar_lea.vmem %s0, %s275
        %p277 = pneg %p40
        %p278 = pneg %p37
        %p279 = scmp.lt.s32.totalorder %s19, 1
        %s280 = scalar_select %p279, %s19, 1
        %s281 = smul.addr %s280, 3
        %s282 = smul.addr %s281, 8
        %s283 = scalar_lea.vmem %s1, %s282
        %p284 = pneg %p66
        %p285 = pneg %p63
        %p286 = pneg %p87
        %p287 = pneg %p84
        %p288 = pneg %p108
        %p289 = pneg %p105
        %p290 = pneg %p129
        %p291 = pneg %p126
        %p292 = pneg %p150
        %p293 = pneg %p147
        %p294 = pneg %p176
        %p295 = pneg %p173
        %p296 = scmp.lt.s32.totalorder %s19, 1
        %s297 = scalar_select %p296, %s19, 1
        %s298 = smul.addr %s297, 3
        %s299 = smul.addr %s298, 8
        %s300 = scalar_lea.vmem %s6, %s299
        %p301 = scmp.lt.s32.totalorder %s19, 1
        %s302 = scalar_select %p301, %s19, 1
        %s303 = smul.addr %s302, 3
        %s304 = smul.addr %s303, 8
        %s305 = scalar_lea.vmem %s0, %s304
        %p306 = scmp.lt.s32.totalorder %s19, 1
        %s307 = scalar_select %p306, %s19, 1
        %s308 = smul.addr %s307, 3
        %s309 = smul.addr %s308, 8
        %s310 = scalar_lea.vmem %s1, %s309
        %p311 = scmp.lt.s32.totalorder %s19, 1
        %s312 = scalar_select %p311, %s19, 1
        %s313 = smul.addr %s312, 3
        %s314 = smul.addr %s313, 8
        %s315 = scalar_lea.vmem %s6, %s314
        %v317 = vld [vmem:[%s305] sm:$0xff]
        %v318 = vld [vmem:[%s305 + $0x8] sm:$0xff]
        %v319 = vld [vmem:[%s305 + $0x10] sm:$0x3]
        %v320 = vpack.c.bf16 %v318, %v317
        %v321 = vpack.c.bf16 %v319, %v319
        %v322 = vld [vmem:[%s310] sm:$0xff]
        %v323 = vld [vmem:[%s310 + $0x8] sm:$0xff]
        %v324 = vld [vmem:[%s310 + $0x10] sm:$0x3]
        %v325 = vpack.c.bf16 %v323, %v322
        %v326 = vpack.c.bf16 %v324, %v324
        %v327 = vld [vmem:[#allocation3] sm:$0xff]
        %v328 = vld [vmem:[#allocation3 + $0x8] sm:$0xf]
        %v329 = vld [vmem:[#allocation3 + $0xc] sm:$0xff]
        %v330 = vld [vmem:[#allocation3 + $0x14] sm:$0xf]
        %v331 = vld [vmem:[#allocation3 + $0x18] sm:$0xff]
        %v332 = vld [vmem:[#allocation3 + $0x20] sm:$0xf]
        %v333 = vld [vmem:[#allocation3 + $0x24] sm:$0xff]
        %v334 = vld [vmem:[#allocation3 + $0x2c] sm:$0xf]
        %v335 = vld [vmem:[#allocation3 + $0x30] sm:$0xff]
        %v336 = vld [vmem:[#allocation3 + $0x38] sm:$0xf]
        %v337 = vld [vmem:[#allocation3 + $0x3c] sm:$0xff]
        %v338 = vld [vmem:[#allocation3 + $0x44] sm:$0xf]
        %v339 = vld [vmem:[#allocation3 + $0x48] sm:$0xff]
        %v340 = vld [vmem:[#allocation3 + $0x50] sm:$0xf]
        %v341 = vld [vmem:[#allocation3 + $0x54] sm:$0xff]
        %v342 = vld [vmem:[#allocation3 + $0x5c] sm:$0xf]
        %v343 = vld [vmem:[#allocation3 + $0x60] sm:$0xff]
        %v344 = vld [vmem:[#allocation3 + $0x68] sm:$0xf]
        %v345 = vld [vmem:[#allocation3 + $0x6c] sm:$0xff]
        %v346 = vld [vmem:[#allocation3 + $0x74] sm:$0xf]
        %v347 = vld [vmem:[#allocation3 + $0x78] sm:$0xff]
        %v348 = vld [vmem:[#allocation3 + $0x80] sm:$0xf]
        %v349 = vld [vmem:[#allocation3 + $0x84] sm:$0xff]
        %v350 = vld [vmem:[#allocation3 + $0x8c] sm:$0xf]
        %v351 = vld [vmem:[#allocation3 + $0x90] sm:$0xff]
        %v352 = vld [vmem:[#allocation3 + $0x98] sm:$0xf]
        %v353 = vld [vmem:[#allocation3 + $0x9c] sm:$0xff]
        %v354 = vld [vmem:[#allocation3 + $0xa4] sm:$0xf]
        %v355 = vld [vmem:[#allocation3 + $0xa8] sm:$0xff]
        %v356 = vld [vmem:[#allocation3 + $0xb0] sm:$0xf]
        %v357 = vld [vmem:[#allocation3 + $0xb4] sm:$0xff]
        %v358 = vld [vmem:[#allocation3 + $0xbc] sm:$0xf]
        %v359 = vld [vmem:[#allocation5] sm:$0xff]
        %v360 = vld [vmem:[#allocation5 + $0x8] sm:$0xff]
        %v361 = vld [vmem:[#allocation5 + $0x10] sm:$0xff]
        %v362 = vld [vmem:[#allocation5 + $0x18] sm:$0xff]
        %v363 = vld [vmem:[#allocation5 + $0x20] sm:$0xff]
        %v364 = vld [vmem:[#allocation5 + $0x28] sm:$0xff]
        %v365 = vld [vmem:[#allocation5 + $0x30] sm:$0xff]
        %v366 = vld [vmem:[#allocation5 + $0x38] sm:$0xff]
        %v367 = vld [vmem:[#allocation5 + $0x40] sm:$0xff]
        %v368 = vld [vmem:[#allocation5 + $0x48] sm:$0xff]
        %v369 = vld [vmem:[#allocation5 + $0x50] sm:$0xff]
        %v370 = vld [vmem:[#allocation5 + $0x58] sm:$0xff]
        %v371 = vld [vmem:[#allocation5 + $0x60] sm:$0xff]
        %v372 = vld [vmem:[#allocation5 + $0x68] sm:$0xff]
        %v373 = vld [vmem:[#allocation5 + $0x70] sm:$0xff]
        %v374 = vld [vmem:[#allocation5 + $0x78] sm:$0xff]
        %v375 = vld [vmem:[%s305 + $0x1] sm:$0xff]
        %v376 = vld [vmem:[%s305 + $0x9] sm:$0xff]
        %v377 = vld [vmem:[%s305 + $0x11] sm:$0x3]
        %v378 = vpack.c.bf16 %v376, %v375
        %v379 = vpack.c.bf16 %v377, %v377
        %v380 = vld [vmem:[%s310 + $0x1] sm:$0xff]
        %v381 = vld [vmem:[%s310 + $0x9] sm:$0xff]
        %v382 = vld [vmem:[%s310 + $0x11] sm:$0x3]
        %v383 = vpack.c.bf16 %v381, %v380
        %v384 = vpack.c.bf16 %v382, %v382
        %s385 = scalar_lea.vmem [#allocation3], 192
        %v386 = vld [vmem:[%s385] sm:$0xff]
        %v387 = vld [vmem:[%s385 + $0x8] sm:$0xf]
        %v388 = vld [vmem:[%s385 + $0xc] sm:$0xff]
        %v389 = vld [vmem:[%s385 + $0x14] sm:$0xf]
        %v390 = vld [vmem:[%s385 + $0x18] sm:$0xff]
        %v391 = vld [vmem:[%s385 + $0x20] sm:$0xf]
        %v392 = vld [vmem:[%s385 + $0x24] sm:$0xff]
        %v393 = vld [vmem:[%s385 + $0x2c] sm:$0xf]
        %v394 = vld [vmem:[%s385 + $0x30] sm:$0xff]
        %v395 = vld [vmem:[%s385 + $0x38] sm:$0xf]
        %v396 = vld [vmem:[%s385 + $0x3c] sm:$0xff]
        %v397 = vld [vmem:[%s385 + $0x44] sm:$0xf]
        %v398 = vld [vmem:[%s385 + $0x48] sm:$0xff]
        %v399 = vld [vmem:[%s385 + $0x50] sm:$0xf]
        %v400 = vld [vmem:[%s385 + $0x54] sm:$0xff]
        %v401 = vld [vmem:[%s385 + $0x5c] sm:$0xf]
        %v402 = vld [vmem:[%s385 + $0x60] sm:$0xff]
        %v403 = vld [vmem:[%s385 + $0x68] sm:$0xf]
        %v404 = vld [vmem:[%s385 + $0x6c] sm:$0xff]
        %v405 = vld [vmem:[%s385 + $0x74] sm:$0xf]
        %v406 = vld [vmem:[%s385 + $0x78] sm:$0xff]
        %v407 = vld [vmem:[%s385 + $0x80] sm:$0xf]
        %v408 = vld [vmem:[%s385 + $0x84] sm:$0xff]
        %v409 = vld [vmem:[%s385 + $0x8c] sm:$0xf]
        %v410 = vld [vmem:[%s385 + $0x90] sm:$0xff]
        %v411 = vld [vmem:[%s385 + $0x98] sm:$0xf]
        %v412 = vld [vmem:[%s385 + $0x9c] sm:$0xff]
        %v413 = vld [vmem:[%s385 + $0xa4] sm:$0xf]
        %v414 = vld [vmem:[%s385 + $0xa8] sm:$0xff]
        %v415 = vld [vmem:[%s385 + $0xb0] sm:$0xf]
        %v416 = vld [vmem:[%s385 + $0xb4] sm:$0xff]
        %v417 = vld [vmem:[%s385 + $0xbc] sm:$0xf]
        %v450 = vunpack.c.l.b16 %v386
        %v451 = vunpack.c.h.b16 %v386
        %v452 = vunpack.c.l.b16 %v387
        %v453 = vunpack.c.l.b16 %v388
        %v454 = vunpack.c.h.b16 %v388
        %v455 = vunpack.c.l.b16 %v389
        %v456 = vunpack.c.l.b16 %v390
        %v457 = vunpack.c.h.b16 %v390
        %v458 = vunpack.c.l.b16 %v391
        %v459 = vunpack.c.l.b16 %v392
        %v460 = vunpack.c.h.b16 %v392
        %v461 = vunpack.c.l.b16 %v393
        %v462 = vunpack.c.l.b16 %v394
        %v463 = vunpack.c.h.b16 %v394
        %v464 = vunpack.c.l.b16 %v395
        %v465 = vunpack.c.l.b16 %v396
        %v466 = vunpack.c.h.b16 %v396
        %v467 = vunpack.c.l.b16 %v397
        %v468 = vunpack.c.l.b16 %v398
        %v469 = vunpack.c.h.b16 %v398
        %v470 = vunpack.c.l.b16 %v399
        %v471 = vunpack.c.l.b16 %v400
        %v472 = vunpack.c.h.b16 %v400
        %v473 = vunpack.c.l.b16 %v401
        %v474 = vunpack.c.l.b16 %v402
        %v475 = vunpack.c.h.b16 %v402
        %v476 = vunpack.c.l.b16 %v403
        %v477 = vunpack.c.l.b16 %v404
        %v478 = vunpack.c.h.b16 %v404
        %v479 = vunpack.c.l.b16 %v405
        %v480 = vunpack.c.l.b16 %v406
        %v481 = vunpack.c.h.b16 %v406
        %v482 = vunpack.c.l.b16 %v407
        %v483 = vunpack.c.l.b16 %v408
        %v484 = vunpack.c.h.b16 %v408
        %v485 = vunpack.c.l.b16 %v409
        %v486 = vunpack.c.l.b16 %v410
        %v487 = vunpack.c.h.b16 %v410
        %v488 = vunpack.c.l.b16 %v411
        %v489 = vunpack.c.l.b16 %v412
        %v490 = vunpack.c.h.b16 %v412
        %v491 = vunpack.c.l.b16 %v413
        %v492 = vunpack.c.l.b16 %v414
        %v493 = vunpack.c.h.b16 %v414
        %v494 = vunpack.c.l.b16 %v415
        %v495 = vunpack.c.l.b16 %v416
        %v496 = vunpack.c.h.b16 %v416
        %v497 = vunpack.c.l.b16 %v417
        %v498 = vpack.c.b16 %v453, %v450
        %v499 = vpack.c.b16 %v454, %v451
        %v500 = vpack.c.b16 %v455, %v452
        %v501 = vpack.c.b16 %v459, %v456
        %v502 = vpack.c.b16 %v460, %v457
        %v503 = vpack.c.b16 %v461, %v458
        %v504 = vpack.c.b16 %v465, %v462
        %v505 = vpack.c.b16 %v466, %v463
        %v506 = vpack.c.b16 %v467, %v464
        %v507 = vpack.c.b16 %v471, %v468
        %v508 = vpack.c.b16 %v472, %v469
        %v509 = vpack.c.b16 %v473, %v470
        %v510 = vpack.c.b16 %v477, %v474
        %v511 = vpack.c.b16 %v478, %v475
        %v512 = vpack.c.b16 %v479, %v476
        %v513 = vpack.c.b16 %v483, %v480
        %v514 = vpack.c.b16 %v484, %v481
        %v515 = vpack.c.b16 %v485, %v482
        %v516 = vpack.c.b16 %v489, %v486
        %v517 = vpack.c.b16 %v490, %v487
        %v518 = vpack.c.b16 %v491, %v488
        %v519 = vpack.c.b16 %v495, %v492
        %v520 = vpack.c.b16 %v496, %v493
        %v521 = vpack.c.b16 %v497, %v494
        %546 = vmatprep.subr.bf16.mxu0 %v520
        %547 = vmatpush1.bf16.msra.mxu0 %v519
        %548 = vmatprep.subr.bf16.mxu0 %v517
        %549 = vmatpush1.bf16.msra.mxu0 %v516
        %550 = vmatprep.subr.bf16.mxu0 %v514
        %551 = vmatpush1.bf16.msra.mxu0 %v513
        %552 = vmatprep.subr.bf16.mxu0 %v511
        %553 = vmatpush1.bf16.msra.mxu0 %v510
        %554 = vmatprep.subr.bf16.mxu0 %v508
        %555 = vmatpush1.bf16.msra.mxu0 %v507
        %556 = vmatprep.subr.bf16.mxu0 %v505
        %557 = vmatpush1.bf16.msra.mxu0 %v504
        %558 = vmatprep.subr.bf16.mxu0 %v502
        %559 = vmatpush1.bf16.msra.mxu0 %v501
        %560 = vmatprep.subr.bf16.mxu0 %v499
        %561 = vmatpush1.bf16.msra.mxu0 %v498
        %562 = vmatprep.subr.bf16.mxu0 0
        %563 = vmatpush2.bf16.msra.mxu0 0
        %564 = vmatprep.subr.bf16.mxu0 0
        %565 = vmatpush2.bf16.msra.mxu0 0
        %566 = vmatprep.subr.bf16.mxu0 0
        %567 = vmatpush2.bf16.msra.mxu0 0
        %568 = vmatprep.subr.bf16.mxu0 0
        %569 = vmatpush2.bf16.msra.mxu0 0
        %570 = vmatprep.subr.bf16.mxu0 0
        %571 = vmatpush2.bf16.msra.mxu0 0
        %572 = vmatprep.subr.bf16.mxu0 0
        %573 = vmatpush2.bf16.msra.mxu0 0
        %574 = vmatprep.subr.bf16.mxu0 0
        %575 = vmatpush2.bf16.msra.mxu0 0
        %576 = vmatprep.subr.bf16.mxu0 0
        %577 = vmatpush2.bf16.msra.mxu0 0
        %578 = vmatprep.mubr.bf16.mxu0 0
        %579 = vmatmul.mubr.bf16.gmra.mxu0 %v378
        %v580 = vpop.f32.mrf.mxu0
        %v581 = vadd.f32 0.0, %v580
        %v582 = vpop.f32.mrf.mxu0
        %v583 = vadd.f32 0.0, %v582
        %v584 = vpop.f32.mrf.mxu0
        %v585 = vadd.f32 0.0, %v584
        %v586 = vpop.f32.mrf.mxu0
        %v587 = vadd.f32 0.0, %v586
        %588 = vmatprep.mubr.bf16.mxu0 0
        %589 = vmatmul.mubr.bf16.gmra.mxu0 %v379
        %v590 = vpop.f32.mrf.mxu0
        %v591 = vadd.f32 0.0, %v590
        %v592 = vpop.f32.mrf.mxu0
        %v593 = vadd.f32 0.0, %v592
        %v594 = vpop.f32.mrf.mxu0
        %v595 = vpop.f32.mrf.mxu0
        %596 = vdwg.mxu0
        %597 = vmatprep.subr.bf16.mxu0 0
        %598 = vmatpush1.bf16.msra.mxu0 %v521
        %599 = vmatprep.subr.bf16.mxu0 0
        %600 = vmatpush1.bf16.msra.mxu0 %v518
        %601 = vmatprep.subr.bf16.mxu0 0
        %602 = vmatpush1.bf16.msra.mxu0 %v515
        %603 = vmatprep.subr.bf16.mxu0 0
        %604 = vmatpush1.bf16.msra.mxu0 %v512
        %605 = vmatprep.subr.bf16.mxu0 0
        %606 = vmatpush1.bf16.msra.mxu0 %v509
        %607 = vmatprep.subr.bf16.mxu0 0
        %608 = vmatpush1.bf16.msra.mxu0 %v506
        %609 = vmatprep.subr.bf16.mxu0 0
        %610 = vmatpush1.bf16.msra.mxu0 %v503
        %611 = vmatprep.subr.bf16.mxu0 0
        %612 = vmatpush1.bf16.msra.mxu0 %v500
        %613 = vmatprep.subr.bf16.mxu0 0
        %614 = vmatpush2.bf16.msra.mxu0 0
        %615 = vmatprep.subr.bf16.mxu0 0
        %616 = vmatpush2.bf16.msra.mxu0 0
        %617 = vmatprep.subr.bf16.mxu0 0
        %618 = vmatpush2.bf16.msra.mxu0 0
        %619 = vmatprep.subr.bf16.mxu0 0
        %620 = vmatpush2.bf16.msra.mxu0 0
        %621 = vmatprep.subr.bf16.mxu0 0
        %622 = vmatpush2.bf16.msra.mxu0 0
        %623 = vmatprep.subr.bf16.mxu0 0
        %624 = vmatpush2.bf16.msra.mxu0 0
        %625 = vmatprep.subr.bf16.mxu0 0
        %626 = vmatpush2.bf16.msra.mxu0 0
        %627 = vmatprep.subr.bf16.mxu0 0
        %628 = vmatpush2.bf16.msra.mxu0 0
        %629 = vmatprep.mubr.bf16.mxu0 0
        %630 = vmatmul.mubr.bf16.gmra.mxu0 %v378
        %v631 = vpop.f32.mrf.mxu0
        %v632 = vadd.f32 0.0, %v631
        %v633 = vpop.f32.mrf.mxu0
        %v634 = vpop.f32.mrf.mxu0
        %v635 = vadd.f32 0.0, %v634
        %v636 = vpop.f32.mrf.mxu0
        %637 = vmatprep.mubr.bf16.mxu0 0
        %638 = vmatmul.mubr.bf16.gmra.mxu0 %v379
        %v639 = vpop.f32.mrf.mxu0
        %v640 = vadd.f32 0.0, %v639
        %v641 = vpop.f32.mrf.mxu0
        %v642 = vpop.f32.mrf.mxu0
        %v643 = vpop.f32.mrf.mxu0
        %644 = vdwg.mxu0
        %v677 = vunpack.c.l.b16 %v327
        %v678 = vunpack.c.h.b16 %v327
        %v679 = vunpack.c.l.b16 %v328
        %v680 = vunpack.c.l.b16 %v329
        %v681 = vunpack.c.h.b16 %v329
        %v682 = vunpack.c.l.b16 %v330
        %v683 = vunpack.c.l.b16 %v331
        %v684 = vunpack.c.h.b16 %v331
        %v685 = vunpack.c.l.b16 %v332
        %v686 = vunpack.c.l.b16 %v333
        %v687 = vunpack.c.h.b16 %v333
        %v688 = vunpack.c.l.b16 %v334
        %v689 = vunpack.c.l.b16 %v335
        %v690 = vunpack.c.h.b16 %v335
        %v691 = vunpack.c.l.b16 %v336
        %v692 = vunpack.c.l.b16 %v337
        %v693 = vunpack.c.h.b16 %v337
        %v694 = vunpack.c.l.b16 %v338
        %v695 = vunpack.c.l.b16 %v339
        %v696 = vunpack.c.h.b16 %v339
        %v697 = vunpack.c.l.b16 %v340
        %v698 = vunpack.c.l.b16 %v341
        %v699 = vunpack.c.h.b16 %v341
        %v700 = vunpack.c.l.b16 %v342
        %v701 = vunpack.c.l.b16 %v343
        %v702 = vunpack.c.h.b16 %v343
        %v703 = vunpack.c.l.b16 %v344
        %v704 = vunpack.c.l.b16 %v345
        %v705 = vunpack.c.h.b16 %v345
        %v706 = vunpack.c.l.b16 %v346
        %v707 = vunpack.c.l.b16 %v347
        %v708 = vunpack.c.h.b16 %v347
        %v709 = vunpack.c.l.b16 %v348
        %v710 = vunpack.c.l.b16 %v349
        %v711 = vunpack.c.h.b16 %v349
        %v712 = vunpack.c.l.b16 %v350
        %v713 = vunpack.c.l.b16 %v351
        %v714 = vunpack.c.h.b16 %v351
        %v715 = vunpack.c.l.b16 %v352
        %v716 = vunpack.c.l.b16 %v353
        %v717 = vunpack.c.h.b16 %v353
        %v718 = vunpack.c.l.b16 %v354
        %v719 = vunpack.c.l.b16 %v355
        %v720 = vunpack.c.h.b16 %v355
        %v721 = vunpack.c.l.b16 %v356
        %v722 = vunpack.c.l.b16 %v357
        %v723 = vunpack.c.h.b16 %v357
        %v724 = vunpack.c.l.b16 %v358
        %v725 = vpack.c.b16 %v680, %v677
        %v726 = vpack.c.b16 %v681, %v678
        %v727 = vpack.c.b16 %v682, %v679
        %v728 = vpack.c.b16 %v686, %v683
        %v729 = vpack.c.b16 %v687, %v684
        %v730 = vpack.c.b16 %v688, %v685
        %v731 = vpack.c.b16 %v692, %v689
        %v732 = vpack.c.b16 %v693, %v690
        %v733 = vpack.c.b16 %v694, %v691
        %v734 = vpack.c.b16 %v698, %v695
        %v735 = vpack.c.b16 %v699, %v696
        %v736 = vpack.c.b16 %v700, %v697
        %v737 = vpack.c.b16 %v704, %v701
        %v738 = vpack.c.b16 %v705, %v702
        %v739 = vpack.c.b16 %v706, %v703
        %v740 = vpack.c.b16 %v710, %v707
        %v741 = vpack.c.b16 %v711, %v708
        %v742 = vpack.c.b16 %v712, %v709
        %v743 = vpack.c.b16 %v716, %v713
        %v744 = vpack.c.b16 %v717, %v714
        %v745 = vpack.c.b16 %v718, %v715
        %v746 = vpack.c.b16 %v722, %v719
        %v747 = vpack.c.b16 %v723, %v720
        %v748 = vpack.c.b16 %v724, %v721
        %773 = vmatprep.subr.bf16.mxu0 %v747
        %774 = vmatpush1.bf16.msra.mxu0 %v746
        %775 = vmatprep.subr.bf16.mxu0 %v744
        %776 = vmatpush1.bf16.msra.mxu0 %v743
        %777 = vmatprep.subr.bf16.mxu0 %v741
        %778 = vmatpush1.bf16.msra.mxu0 %v740
        %779 = vmatprep.subr.bf16.mxu0 %v738
        %780 = vmatpush1.bf16.msra.mxu0 %v737
        %781 = vmatprep.subr.bf16.mxu0 %v735
        %782 = vmatpush1.bf16.msra.mxu0 %v734
        %783 = vmatprep.subr.bf16.mxu0 %v732
        %784 = vmatpush1.bf16.msra.mxu0 %v731
        %785 = vmatprep.subr.bf16.mxu0 %v729
        %786 = vmatpush1.bf16.msra.mxu0 %v728
        %787 = vmatprep.subr.bf16.mxu0 %v726
        %788 = vmatpush1.bf16.msra.mxu0 %v725
        %789 = vmatprep.subr.bf16.mxu0 0
        %790 = vmatpush2.bf16.msra.mxu0 0
        %791 = vmatprep.subr.bf16.mxu0 0
        %792 = vmatpush2.bf16.msra.mxu0 0
        %793 = vmatprep.subr.bf16.mxu0 0
        %794 = vmatpush2.bf16.msra.mxu0 0
        %795 = vmatprep.subr.bf16.mxu0 0
        %796 = vmatpush2.bf16.msra.mxu0 0
        %797 = vmatprep.subr.bf16.mxu0 0
        %798 = vmatpush2.bf16.msra.mxu0 0
        %799 = vmatprep.subr.bf16.mxu0 0
        %800 = vmatpush2.bf16.msra.mxu0 0
        %801 = vmatprep.subr.bf16.mxu0 0
        %802 = vmatpush2.bf16.msra.mxu0 0
        %803 = vmatprep.subr.bf16.mxu0 0
        %804 = vmatpush2.bf16.msra.mxu0 0
        %805 = vmatprep.mubr.bf16.mxu0 0
        %806 = vmatmul.mubr.bf16.gmra.mxu0 %v320
        %v807 = vpop.f32.mrf.mxu0
        %v808 = vadd.f32 %v581, %v807
        %v809 = vpop.f32.mrf.mxu0
        %v810 = vadd.f32 %v583, %v809
        %v811 = vpop.f32.mrf.mxu0
        %v812 = vadd.f32 %v585, %v811
        %v813 = vpop.f32.mrf.mxu0
        %v814 = vadd.f32 %v587, %v813
        %815 = vmatprep.mubr.bf16.mxu0 0
        %816 = vmatmul.mubr.bf16.gmra.mxu0 %v321
        %v817 = vpop.f32.mrf.mxu0
        %v818 = vadd.f32 %v591, %v817
        %v819 = vpop.f32.mrf.mxu0
        %v820 = vadd.f32 %v593, %v819
        %v821 = vpop.f32.mrf.mxu0
        %v822 = vpop.f32.mrf.mxu0
        %823 = vdwg.mxu0
        %824 = vmatprep.subr.bf16.mxu0 0
        %825 = vmatpush1.bf16.msra.mxu0 %v748
        %826 = vmatprep.subr.bf16.mxu0 0
        %827 = vmatpush1.bf16.msra.mxu0 %v745
        %828 = vmatprep.subr.bf16.mxu0 0
        %829 = vmatpush1.bf16.msra.mxu0 %v742
        %830 = vmatprep.subr.bf16.mxu0 0
        %831 = vmatpush1.bf16.msra.mxu0 %v739
        %832 = vmatprep.subr.bf16.mxu0 0
        %833 = vmatpush1.bf16.msra.mxu0 %v736
        %834 = vmatprep.subr.bf16.mxu0 0
        %835 = vmatpush1.bf16.msra.mxu0 %v733
        %836 = vmatprep.subr.bf16.mxu0 0
        %837 = vmatpush1.bf16.msra.mxu0 %v730
        %838 = vmatprep.subr.bf16.mxu0 0
        %839 = vmatpush1.bf16.msra.mxu0 %v727
        %840 = vmatprep.subr.bf16.mxu0 0
        %841 = vmatpush2.bf16.msra.mxu0 0
        %842 = vmatprep.subr.bf16.mxu0 0
        %843 = vmatpush2.bf16.msra.mxu0 0
        %844 = vmatprep.subr.bf16.mxu0 0
        %845 = vmatpush2.bf16.msra.mxu0 0
        %846 = vmatprep.subr.bf16.mxu0 0
        %847 = vmatpush2.bf16.msra.mxu0 0
        %848 = vmatprep.subr.bf16.mxu0 0
        %849 = vmatpush2.bf16.msra.mxu0 0
        %850 = vmatprep.subr.bf16.mxu0 0
        %851 = vmatpush2.bf16.msra.mxu0 0
        %852 = vmatprep.subr.bf16.mxu0 0
        %853 = vmatpush2.bf16.msra.mxu0 0
        %854 = vmatprep.subr.bf16.mxu0 0
        %855 = vmatpush2.bf16.msra.mxu0 0
        %856 = vmatprep.mubr.bf16.mxu0 0
        %857 = vmatmul.mubr.bf16.gmra.mxu0 %v320
        %v858 = vpop.f32.mrf.mxu0
        %v859 = vadd.f32 %v632, %v858
        %v860 = vpop.f32.mrf.mxu0
        %v861 = vpop.f32.mrf.mxu0
        %v862 = vadd.f32 %v635, %v861
        %v863 = vpop.f32.mrf.mxu0
        %864 = vmatprep.mubr.bf16.mxu0 0
        %865 = vmatmul.mubr.bf16.gmra.mxu0 %v321
        %v866 = vpop.f32.mrf.mxu0
        %v867 = vadd.f32 %v640, %v866
        %v868 = vpop.f32.mrf.mxu0
        %v869 = vpop.f32.mrf.mxu0
        %v870 = vpop.f32.mrf.mxu0
        %871 = vdwg.mxu0
        %s872 = scalar_lea.vmem [#allocation5], 128
        %v873 = vld [vmem:[%s872] sm:$0xff]
        %v874 = vld [vmem:[%s872 + $0x8] sm:$0xff]
        %v875 = vld [vmem:[%s872 + $0x10] sm:$0xff]
        %v876 = vld [vmem:[%s872 + $0x18] sm:$0xff]
        %v877 = vld [vmem:[%s872 + $0x20] sm:$0xff]
        %v878 = vld [vmem:[%s872 + $0x28] sm:$0xff]
        %v879 = vld [vmem:[%s872 + $0x30] sm:$0xff]
        %v880 = vld [vmem:[%s872 + $0x38] sm:$0xff]
        %v881 = vld [vmem:[%s872 + $0x40] sm:$0xff]
        %v882 = vld [vmem:[%s872 + $0x48] sm:$0xff]
        %v883 = vld [vmem:[%s872 + $0x50] sm:$0xff]
        %v884 = vld [vmem:[%s872 + $0x58] sm:$0xff]
        %v885 = vld [vmem:[%s872 + $0x60] sm:$0xff]
        %v886 = vld [vmem:[%s872 + $0x68] sm:$0xff]
        %v887 = vld [vmem:[%s872 + $0x70] sm:$0xff]
        %v888 = vld [vmem:[%s872 + $0x78] sm:$0xff]
        %v905 = vunpack.c.l.b16 %v873
        %v906 = vunpack.c.h.b16 %v873
        %v907 = vunpack.c.l.b16 %v874
        %v908 = vunpack.c.h.b16 %v874
        %v909 = vunpack.c.l.b16 %v875
        %v910 = vunpack.c.h.b16 %v875
        %v911 = vunpack.c.l.b16 %v876
        %v912 = vunpack.c.h.b16 %v876
        %v913 = vunpack.c.l.b16 %v877
        %v914 = vunpack.c.h.b16 %v877
        %v915 = vunpack.c.l.b16 %v878
        %v916 = vunpack.c.h.b16 %v878
        %v917 = vunpack.c.l.b16 %v879
        %v918 = vunpack.c.h.b16 %v879
        %v919 = vunpack.c.l.b16 %v880
        %v920 = vunpack.c.h.b16 %v880
        %v921 = vunpack.c.l.b16 %v881
        %v922 = vunpack.c.h.b16 %v881
        %v923 = vunpack.c.l.b16 %v882
        %v924 = vunpack.c.h.b16 %v882
        %v925 = vunpack.c.l.b16 %v883
        %v926 = vunpack.c.h.b16 %v883
        %v927 = vunpack.c.l.b16 %v884
        %v928 = vunpack.c.h.b16 %v884
        %v929 = vunpack.c.l.b16 %v885
        %v930 = vunpack.c.h.b16 %v885
        %v931 = vunpack.c.l.b16 %v886
        %v932 = vunpack.c.h.b16 %v886
        %v933 = vunpack.c.l.b16 %v887
        %v934 = vunpack.c.h.b16 %v887
        %v935 = vunpack.c.l.b16 %v888
        %v936 = vunpack.c.h.b16 %v888
        %v937 = vpack.c.b16 %v907, %v905
        %v938 = vpack.c.b16 %v908, %v906
        %v939 = vpack.c.b16 %v911, %v909
        %v940 = vpack.c.b16 %v912, %v910
        %v941 = vpack.c.b16 %v915, %v913
        %v942 = vpack.c.b16 %v916, %v914
        %v943 = vpack.c.b16 %v919, %v917
        %v944 = vpack.c.b16 %v920, %v918
        %v945 = vpack.c.b16 %v923, %v921
        %v946 = vpack.c.b16 %v924, %v922
        %v947 = vpack.c.b16 %v927, %v925
        %v948 = vpack.c.b16 %v928, %v926
        %v949 = vpack.c.b16 %v931, %v929
        %v950 = vpack.c.b16 %v932, %v930
        %v951 = vpack.c.b16 %v935, %v933
        %v952 = vpack.c.b16 %v936, %v934
        %969 = vmatprep.subr.bf16.mxu0 %v952
        %970 = vmatpush1.bf16.msra.mxu0 %v951
        %971 = vmatprep.subr.bf16.mxu0 %v950
        %972 = vmatpush1.bf16.msra.mxu0 %v949
        %973 = vmatprep.subr.bf16.mxu0 %v948
        %974 = vmatpush1.bf16.msra.mxu0 %v947
        %975 = vmatprep.subr.bf16.mxu0 %v946
        %976 = vmatpush1.bf16.msra.mxu0 %v945
        %977 = vmatprep.subr.bf16.mxu0 %v944
        %978 = vmatpush1.bf16.msra.mxu0 %v943
        %979 = vmatprep.subr.bf16.mxu0 %v942
        %980 = vmatpush1.bf16.msra.mxu0 %v941
        %981 = vmatprep.subr.bf16.mxu0 %v940
        %982 = vmatpush1.bf16.msra.mxu0 %v939
        %983 = vmatprep.subr.bf16.mxu0 %v938
        %984 = vmatpush1.bf16.msra.mxu0 %v937
        %985 = vmatprep.subr.bf16.mxu0 0
        %986 = vmatpush2.bf16.msra.mxu0 0
        %987 = vmatprep.subr.bf16.mxu0 0
        %988 = vmatpush2.bf16.msra.mxu0 0
        %989 = vmatprep.subr.bf16.mxu0 0
        %990 = vmatpush2.bf16.msra.mxu0 0
        %991 = vmatprep.subr.bf16.mxu0 0
        %992 = vmatpush2.bf16.msra.mxu0 0
        %993 = vmatprep.subr.bf16.mxu0 0
        %994 = vmatpush2.bf16.msra.mxu0 0
        %995 = vmatprep.subr.bf16.mxu0 0
        %996 = vmatpush2.bf16.msra.mxu0 0
        %997 = vmatprep.subr.bf16.mxu0 0
        %998 = vmatpush2.bf16.msra.mxu0 0
        %999 = vmatprep.subr.bf16.mxu0 0
        %1000 = vmatpush2.bf16.msra.mxu0 0
        %1001 = vmatprep.mubr.bf16.mxu0 0
        %1002 = vmatmul.mubr.bf16.gmra.mxu0 %v383
        %v1003 = vpop.f32.mrf.mxu0
        %v1004 = vadd.f32 0.0, %v1003
        %v1005 = vpop.f32.mrf.mxu0
        %v1006 = vadd.f32 0.0, %v1005
        %v1007 = vpop.f32.mrf.mxu0
        %v1008 = vadd.f32 0.0, %v1007
        %v1009 = vpop.f32.mrf.mxu0
        %v1010 = vadd.f32 0.0, %v1009
        %1011 = vmatprep.mubr.bf16.mxu0 0
        %1012 = vmatmul.mubr.bf16.gmra.mxu0 %v384
        %v1013 = vpop.f32.mrf.mxu0
        %v1014 = vadd.f32 0.0, %v1013
        %v1015 = vpop.f32.mrf.mxu0
        %v1016 = vadd.f32 0.0, %v1015
        %v1017 = vpop.f32.mrf.mxu0
        %v1018 = vpop.f32.mrf.mxu0
        %1019 = vdwg.mxu0
        %v1036 = vunpack.c.l.b16 %v359
        %v1037 = vunpack.c.h.b16 %v359
        %v1038 = vunpack.c.l.b16 %v360
        %v1039 = vunpack.c.h.b16 %v360
        %v1040 = vunpack.c.l.b16 %v361
        %v1041 = vunpack.c.h.b16 %v361
        %v1042 = vunpack.c.l.b16 %v362
        %v1043 = vunpack.c.h.b16 %v362
        %v1044 = vunpack.c.l.b16 %v363
        %v1045 = vunpack.c.h.b16 %v363
        %v1046 = vunpack.c.l.b16 %v364
        %v1047 = vunpack.c.h.b16 %v364
        %v1048 = vunpack.c.l.b16 %v365
        %v1049 = vunpack.c.h.b16 %v365
        %v1050 = vunpack.c.l.b16 %v366
        %v1051 = vunpack.c.h.b16 %v366
        %v1052 = vunpack.c.l.b16 %v367
        %v1053 = vunpack.c.h.b16 %v367
        %v1054 = vunpack.c.l.b16 %v368
        %v1055 = vunpack.c.h.b16 %v368
        %v1056 = vunpack.c.l.b16 %v369
        %v1057 = vunpack.c.h.b16 %v369
        %v1058 = vunpack.c.l.b16 %v370
        %v1059 = vunpack.c.h.b16 %v370
        %v1060 = vunpack.c.l.b16 %v371
        %v1061 = vunpack.c.h.b16 %v371
        %v1062 = vunpack.c.l.b16 %v372
        %v1063 = vunpack.c.h.b16 %v372
        %v1064 = vunpack.c.l.b16 %v373
        %v1065 = vunpack.c.h.b16 %v373
        %v1066 = vunpack.c.l.b16 %v374
        %v1067 = vunpack.c.h.b16 %v374
        %v1068 = vpack.c.b16 %v1038, %v1036
        %v1069 = vpack.c.b16 %v1039, %v1037
        %v1070 = vpack.c.b16 %v1042, %v1040
        %v1071 = vpack.c.b16 %v1043, %v1041
        %v1072 = vpack.c.b16 %v1046, %v1044
        %v1073 = vpack.c.b16 %v1047, %v1045
        %v1074 = vpack.c.b16 %v1050, %v1048
        %v1075 = vpack.c.b16 %v1051, %v1049
        %v1076 = vpack.c.b16 %v1054, %v1052
        %v1077 = vpack.c.b16 %v1055, %v1053
        %v1078 = vpack.c.b16 %v1058, %v1056
        %v1079 = vpack.c.b16 %v1059, %v1057
        %v1080 = vpack.c.b16 %v1062, %v1060
        %v1081 = vpack.c.b16 %v1063, %v1061
        %v1082 = vpack.c.b16 %v1066, %v1064
        %v1083 = vpack.c.b16 %v1067, %v1065
        %1100 = vmatprep.subr.bf16.mxu0 %v1083
        %1101 = vmatpush1.bf16.msra.mxu0 %v1082
        %1102 = vmatprep.subr.bf16.mxu0 %v1081
        %1103 = vmatpush1.bf16.msra.mxu0 %v1080
        %1104 = vmatprep.subr.bf16.mxu0 %v1079
        %1105 = vmatpush1.bf16.msra.mxu0 %v1078
        %1106 = vmatprep.subr.bf16.mxu0 %v1077
        %1107 = vmatpush1.bf16.msra.mxu0 %v1076
        %1108 = vmatprep.subr.bf16.mxu0 %v1075
        %1109 = vmatpush1.bf16.msra.mxu0 %v1074
        %1110 = vmatprep.subr.bf16.mxu0 %v1073
        %1111 = vmatpush1.bf16.msra.mxu0 %v1072
        %1112 = vmatprep.subr.bf16.mxu0 %v1071
        %1113 = vmatpush1.bf16.msra.mxu0 %v1070
        %1114 = vmatprep.subr.bf16.mxu0 %v1069
        %1115 = vmatpush1.bf16.msra.mxu0 %v1068
        %1116 = vmatprep.subr.bf16.mxu0 0
        %1117 = vmatpush2.bf16.msra.mxu0 0
        %1118 = vmatprep.subr.bf16.mxu0 0
        %1119 = vmatpush2.bf16.msra.mxu0 0
        %1120 = vmatprep.subr.bf16.mxu0 0
        %1121 = vmatpush2.bf16.msra.mxu0 0
        %1122 = vmatprep.subr.bf16.mxu0 0
        %1123 = vmatpush2.bf16.msra.mxu0 0
        %1124 = vmatprep.subr.bf16.mxu0 0
        %1125 = vmatpush2.bf16.msra.mxu0 0
        %1126 = vmatprep.subr.bf16.mxu0 0
        %1127 = vmatpush2.bf16.msra.mxu0 0
        %1128 = vmatprep.subr.bf16.mxu0 0
        %1129 = vmatpush2.bf16.msra.mxu0 0
        %1130 = vmatprep.subr.bf16.mxu0 0
        %1131 = vmatpush2.bf16.msra.mxu0 0
        %1132 = vmatprep.mubr.bf16.mxu0 0
        %1133 = vmatmul.mubr.bf16.gmra.mxu0 %v325
        %v1134 = vpop.f32.mrf.mxu0
        %v1135 = vadd.f32 %v1004, %v1134
        %v1136 = vpop.f32.mrf.mxu0
        %v1137 = vadd.f32 %v1006, %v1136
        %v1138 = vpop.f32.mrf.mxu0
        %v1139 = vadd.f32 %v1008, %v1138
        %v1140 = vpop.f32.mrf.mxu0
        %v1141 = vadd.f32 %v1010, %v1140
        %1142 = vmatprep.mubr.bf16.mxu0 0
        %1143 = vmatmul.mubr.bf16.gmra.mxu0 %v326
        %v1144 = vpop.f32.mrf.mxu0
        %v1145 = vadd.f32 %v1014, %v1144
        %v1146 = vpop.f32.mrf.mxu0
        %v1147 = vadd.f32 %v1016, %v1146
        %v1148 = vpop.f32.mrf.mxu0
        %v1149 = vpop.f32.mrf.mxu0
        %1150 = vdwg.mxu0
        %v1151 = vld [vmem:[%s305 + $0x2] sm:$0xff]
        %v1152 = vld [vmem:[%s305 + $0xa] sm:$0xff]
        %v1153 = vld [vmem:[%s305 + $0x12] sm:$0x3]
        %v1154 = vpack.c.bf16 %v1152, %v1151
        %v1155 = vpack.c.bf16 %v1153, %v1153
        %v1156 = vld [vmem:[%s310 + $0x2] sm:$0xff]
        %v1157 = vld [vmem:[%s310 + $0xa] sm:$0xff]
        %v1158 = vld [vmem:[%s310 + $0x12] sm:$0x3]
        %v1159 = vpack.c.bf16 %v1157, %v1156
        %v1160 = vpack.c.bf16 %v1158, %v1158
        %s1161 = scalar_lea.vmem [#allocation3], 384
        %v1162 = vld [vmem:[%s1161] sm:$0xff]
        %v1163 = vld [vmem:[%s1161 + $0x8] sm:$0xf]
        %v1164 = vld [vmem:[%s1161 + $0xc] sm:$0xff]
        %v1165 = vld [vmem:[%s1161 + $0x14] sm:$0xf]
        %v1166 = vld [vmem:[%s1161 + $0x18] sm:$0xff]
        %v1167 = vld [vmem:[%s1161 + $0x20] sm:$0xf]
        %v1168 = vld [vmem:[%s1161 + $0x24] sm:$0xff]
        %v1169 = vld [vmem:[%s1161 + $0x2c] sm:$0xf]
        %v1170 = vld [vmem:[%s1161 + $0x30] sm:$0xff]
        %v1171 = vld [vmem:[%s1161 + $0x38] sm:$0xf]
        %v1172 = vld [vmem:[%s1161 + $0x3c] sm:$0xff]
        %v1173 = vld [vmem:[%s1161 + $0x44] sm:$0xf]
        %v1174 = vld [vmem:[%s1161 + $0x48] sm:$0xff]
        %v1175 = vld [vmem:[%s1161 + $0x50] sm:$0xf]
        %v1176 = vld [vmem:[%s1161 + $0x54] sm:$0xff]
        %v1177 = vld [vmem:[%s1161 + $0x5c] sm:$0xf]
        %v1178 = vld [vmem:[%s1161 + $0x60] sm:$0xff]
        %v1179 = vld [vmem:[%s1161 + $0x68] sm:$0xf]
        %v1180 = vld [vmem:[%s1161 + $0x6c] sm:$0xff]
        %v1181 = vld [vmem:[%s1161 + $0x74] sm:$0xf]
        %v1182 = vld [vmem:[%s1161 + $0x78] sm:$0xff]
        %v1183 = vld [vmem:[%s1161 + $0x80] sm:$0xf]
        %v1184 = vld [vmem:[%s1161 + $0x84] sm:$0xff]
        %v1185 = vld [vmem:[%s1161 + $0x8c] sm:$0xf]
        %v1186 = vld [vmem:[%s1161 + $0x90] sm:$0xff]
        %v1187 = vld [vmem:[%s1161 + $0x98] sm:$0xf]
        %v1188 = vld [vmem:[%s1161 + $0x9c] sm:$0xff]
        %v1189 = vld [vmem:[%s1161 + $0xa4] sm:$0xf]
        %v1190 = vld [vmem:[%s1161 + $0xa8] sm:$0xff]
        %v1191 = vld [vmem:[%s1161 + $0xb0] sm:$0xf]
        %v1192 = vld [vmem:[%s1161 + $0xb4] sm:$0xff]
        %v1193 = vld [vmem:[%s1161 + $0xbc] sm:$0xf]
        %v1226 = vunpack.c.l.b16 %v1162
        %v1227 = vunpack.c.h.b16 %v1162
        %v1228 = vunpack.c.l.b16 %v1163
        %v1229 = vunpack.c.l.b16 %v1164
        %v1230 = vunpack.c.h.b16 %v1164
        %v1231 = vunpack.c.l.b16 %v1165
        %v1232 = vunpack.c.l.b16 %v1166
        %v1233 = vunpack.c.h.b16 %v1166
        %v1234 = vunpack.c.l.b16 %v1167
        %v1235 = vunpack.c.l.b16 %v1168
        %v1236 = vunpack.c.h.b16 %v1168
        %v1237 = vunpack.c.l.b16 %v1169
        %v1238 = vunpack.c.l.b16 %v1170
        %v1239 = vunpack.c.h.b16 %v1170
        %v1240 = vunpack.c.l.b16 %v1171
        %v1241 = vunpack.c.l.b16 %v1172
        %v1242 = vunpack.c.h.b16 %v1172
        %v1243 = vunpack.c.l.b16 %v1173
        %v1244 = vunpack.c.l.b16 %v1174
        %v1245 = vunpack.c.h.b16 %v1174
        %v1246 = vunpack.c.l.b16 %v1175
        %v1247 = vunpack.c.l.b16 %v1176
        %v1248 = vunpack.c.h.b16 %v1176
        %v1249 = vunpack.c.l.b16 %v1177
        %v1250 = vunpack.c.l.b16 %v1178
        %v1251 = vunpack.c.h.b16 %v1178
        %v1252 = vunpack.c.l.b16 %v1179
        %v1253 = vunpack.c.l.b16 %v1180
        %v1254 = vunpack.c.h.b16 %v1180
        %v1255 = vunpack.c.l.b16 %v1181
        %v1256 = vunpack.c.l.b16 %v1182
        %v1257 = vunpack.c.h.b16 %v1182
        %v1258 = vunpack.c.l.b16 %v1183
        %v1259 = vunpack.c.l.b16 %v1184
        %v1260 = vunpack.c.h.b16 %v1184
        %v1261 = vunpack.c.l.b16 %v1185
        %v1262 = vunpack.c.l.b16 %v1186
        %v1263 = vunpack.c.h.b16 %v1186
        %v1264 = vunpack.c.l.b16 %v1187
        %v1265 = vunpack.c.l.b16 %v1188
        %v1266 = vunpack.c.h.b16 %v1188
        %v1267 = vunpack.c.l.b16 %v1189
        %v1268 = vunpack.c.l.b16 %v1190
        %v1269 = vunpack.c.h.b16 %v1190
        %v1270 = vunpack.c.l.b16 %v1191
        %v1271 = vunpack.c.l.b16 %v1192
        %v1272 = vunpack.c.h.b16 %v1192
        %v1273 = vunpack.c.l.b16 %v1193
        %v1274 = vpack.c.b16 %v1229, %v1226
        %v1275 = vpack.c.b16 %v1230, %v1227
        %v1276 = vpack.c.b16 %v1231, %v1228
        %v1277 = vpack.c.b16 %v1235, %v1232
        %v1278 = vpack.c.b16 %v1236, %v1233
        %v1279 = vpack.c.b16 %v1237, %v1234
        %v1280 = vpack.c.b16 %v1241, %v1238
        %v1281 = vpack.c.b16 %v1242, %v1239
        %v1282 = vpack.c.b16 %v1243, %v1240
        %v1283 = vpack.c.b16 %v1247, %v1244
        %v1284 = vpack.c.b16 %v1248, %v1245
        %v1285 = vpack.c.b16 %v1249, %v1246
        %v1286 = vpack.c.b16 %v1253, %v1250
        %v1287 = vpack.c.b16 %v1254, %v1251
        %v1288 = vpack.c.b16 %v1255, %v1252
        %v1289 = vpack.c.b16 %v1259, %v1256
        %v1290 = vpack.c.b16 %v1260, %v1257
        %v1291 = vpack.c.b16 %v1261, %v1258
        %v1292 = vpack.c.b16 %v1265, %v1262
        %v1293 = vpack.c.b16 %v1266, %v1263
        %v1294 = vpack.c.b16 %v1267, %v1264
        %v1295 = vpack.c.b16 %v1271, %v1268
        %v1296 = vpack.c.b16 %v1272, %v1269
        %v1297 = vpack.c.b16 %v1273, %v1270
        %1322 = vmatprep.subr.bf16.mxu0 %v1296
        %1323 = vmatpush1.bf16.msra.mxu0 %v1295
        %1324 = vmatprep.subr.bf16.mxu0 %v1293
        %1325 = vmatpush1.bf16.msra.mxu0 %v1292
        %1326 = vmatprep.subr.bf16.mxu0 %v1290
        %1327 = vmatpush1.bf16.msra.mxu0 %v1289
        %1328 = vmatprep.subr.bf16.mxu0 %v1287
        %1329 = vmatpush1.bf16.msra.mxu0 %v1286
        %1330 = vmatprep.subr.bf16.mxu0 %v1284
        %1331 = vmatpush1.bf16.msra.mxu0 %v1283
        %1332 = vmatprep.subr.bf16.mxu0 %v1281
        %1333 = vmatpush1.bf16.msra.mxu0 %v1280
        %1334 = vmatprep.subr.bf16.mxu0 %v1278
        %1335 = vmatpush1.bf16.msra.mxu0 %v1277
        %1336 = vmatprep.subr.bf16.mxu0 %v1275
        %1337 = vmatpush1.bf16.msra.mxu0 %v1274
        %1338 = vmatprep.subr.bf16.mxu0 0
        %1339 = vmatpush2.bf16.msra.mxu0 0
        %1340 = vmatprep.subr.bf16.mxu0 0
        %1341 = vmatpush2.bf16.msra.mxu0 0
        %1342 = vmatprep.subr.bf16.mxu0 0
        %1343 = vmatpush2.bf16.msra.mxu0 0
        %1344 = vmatprep.subr.bf16.mxu0 0
        %1345 = vmatpush2.bf16.msra.mxu0 0
        %1346 = vmatprep.subr.bf16.mxu0 0
        %1347 = vmatpush2.bf16.msra.mxu0 0
        %1348 = vmatprep.subr.bf16.mxu0 0
        %1349 = vmatpush2.bf16.msra.mxu0 0
        %1350 = vmatprep.subr.bf16.mxu0 0
        %1351 = vmatpush2.bf16.msra.mxu0 0
        %1352 = vmatprep.subr.bf16.mxu0 0
        %1353 = vmatpush2.bf16.msra.mxu0 0
        %1354 = vmatprep.mubr.bf16.mxu0 0
        %1355 = vmatmul.mubr.bf16.gmra.mxu0 %v1154
        %v1356 = vpop.f32.mrf.mxu0
        %v1357 = vadd.f32 0.0, %v1356
        %v1358 = vpop.f32.mrf.mxu0
        %v1359 = vadd.f32 0.0, %v1358
        %v1360 = vpop.f32.mrf.mxu0
        %v1361 = vadd.f32 0.0, %v1360
        %v1362 = vpop.f32.mrf.mxu0
        %v1363 = vadd.f32 0.0, %v1362
        %1364 = vmatprep.mubr.bf16.mxu0 0
        %1365 = vmatmul.mubr.bf16.gmra.mxu0 %v1155
        %v1366 = vpop.f32.mrf.mxu0
        %v1367 = vadd.f32 0.0, %v1366
        %v1368 = vpop.f32.mrf.mxu0
        %v1369 = vadd.f32 0.0, %v1368
        %v1370 = vpop.f32.mrf.mxu0
        %v1371 = vpop.f32.mrf.mxu0
        %1372 = vdwg.mxu0
        %1373 = vmatprep.subr.bf16.mxu0 0
        %1374 = vmatpush1.bf16.msra.mxu0 %v1297
        %1375 = vmatprep.subr.bf16.mxu0 0
        %1376 = vmatpush1.bf16.msra.mxu0 %v1294
        %1377 = vmatprep.subr.bf16.mxu0 0
        %1378 = vmatpush1.bf16.msra.mxu0 %v1291
        %1379 = vmatprep.subr.bf16.mxu0 0
        %1380 = vmatpush1.bf16.msra.mxu0 %v1288
        %1381 = vmatprep.subr.bf16.mxu0 0
        %1382 = vmatpush1.bf16.msra.mxu0 %v1285
        %1383 = vmatprep.subr.bf16.mxu0 0
        %1384 = vmatpush1.bf16.msra.mxu0 %v1282
        %1385 = vmatprep.subr.bf16.mxu0 0
        %1386 = vmatpush1.bf16.msra.mxu0 %v1279
        %1387 = vmatprep.subr.bf16.mxu0 0
        %1388 = vmatpush1.bf16.msra.mxu0 %v1276
        %1389 = vmatprep.subr.bf16.mxu0 0
        %1390 = vmatpush2.bf16.msra.mxu0 0
        %1391 = vmatprep.subr.bf16.mxu0 0
        %1392 = vmatpush2.bf16.msra.mxu0 0
        %1393 = vmatprep.subr.bf16.mxu0 0
        %1394 = vmatpush2.bf16.msra.mxu0 0
        %1395 = vmatprep.subr.bf16.mxu0 0
        %1396 = vmatpush2.bf16.msra.mxu0 0
        %1397 = vmatprep.subr.bf16.mxu0 0
        %1398 = vmatpush2.bf16.msra.mxu0 0
        %1399 = vmatprep.subr.bf16.mxu0 0
        %1400 = vmatpush2.bf16.msra.mxu0 0
        %1401 = vmatprep.subr.bf16.mxu0 0
        %1402 = vmatpush2.bf16.msra.mxu0 0
        %1403 = vmatprep.subr.bf16.mxu0 0
        %1404 = vmatpush2.bf16.msra.mxu0 0
        %1405 = vmatprep.mubr.bf16.mxu0 0
        %1406 = vmatmul.mubr.bf16.gmra.mxu0 %v1154
        %v1407 = vpop.f32.mrf.mxu0
        %v1408 = vadd.f32 0.0, %v1407
        %v1409 = vpop.f32.mrf.mxu0
        %v1410 = vpop.f32.mrf.mxu0
        %v1411 = vadd.f32 0.0, %v1410
        %v1412 = vpop.f32.mrf.mxu0
        %1413 = vmatprep.mubr.bf16.mxu0 0
        %1414 = vmatmul.mubr.bf16.gmra.mxu0 %v1155
        %v1415 = vpop.f32.mrf.mxu0
        %v1416 = vadd.f32 0.0, %v1415
        %v1417 = vpop.f32.mrf.mxu0
        %v1418 = vpop.f32.mrf.mxu0
        %v1419 = vpop.f32.mrf.mxu0
        %1420 = vdwg.mxu0
        %v1421 = vadd.f32 %v808, %v1357
        %v1422 = vadd.f32 %v810, %v1359
        %v1423 = vadd.f32 %v859, %v1408
        %v1424 = vadd.f32 %v812, %v1361
        %v1425 = vadd.f32 %v814, %v1363
        %v1426 = vadd.f32 %v862, %v1411
        %v1427 = vadd.f32 %v818, %v1367
        %v1428 = vadd.f32 %v820, %v1369
        %v1429 = vadd.f32 %v867, %v1416
        %s1430 = scalar_lea.vmem [#allocation5], 256
        %v1431 = vld [vmem:[%s1430] sm:$0xff]
        %v1432 = vld [vmem:[%s1430 + $0x8] sm:$0xff]
        %v1433 = vld [vmem:[%s1430 + $0x10] sm:$0xff]
        %v1434 = vld [vmem:[%s1430 + $0x18] sm:$0xff]
        %v1435 = vld [vmem:[%s1430 + $0x20] sm:$0xff]
        %v1436 = vld [vmem:[%s1430 + $0x28] sm:$0xff]
        %v1437 = vld [vmem:[%s1430 + $0x30] sm:$0xff]
        %v1438 = vld [vmem:[%s1430 + $0x38] sm:$0xff]
        %v1439 = vld [vmem:[%s1430 + $0x40] sm:$0xff]
        %v1440 = vld [vmem:[%s1430 + $0x48] sm:$0xff]
        %v1441 = vld [vmem:[%s1430 + $0x50] sm:$0xff]
        %v1442 = vld [vmem:[%s1430 + $0x58] sm:$0xff]
        %v1443 = vld [vmem:[%s1430 + $0x60] sm:$0xff]
        %v1444 = vld [vmem:[%s1430 + $0x68] sm:$0xff]
        %v1445 = vld [vmem:[%s1430 + $0x70] sm:$0xff]
        %v1446 = vld [vmem:[%s1430 + $0x78] sm:$0xff]
        %v1463 = vunpack.c.l.b16 %v1431
        %v1464 = vunpack.c.h.b16 %v1431
        %v1465 = vunpack.c.l.b16 %v1432
        %v1466 = vunpack.c.h.b16 %v1432
        %v1467 = vunpack.c.l.b16 %v1433
        %v1468 = vunpack.c.h.b16 %v1433
        %v1469 = vunpack.c.l.b16 %v1434
        %v1470 = vunpack.c.h.b16 %v1434
        %v1471 = vunpack.c.l.b16 %v1435
        %v1472 = vunpack.c.h.b16 %v1435
        %v1473 = vunpack.c.l.b16 %v1436
        %v1474 = vunpack.c.h.b16 %v1436
        %v1475 = vunpack.c.l.b16 %v1437
        %v1476 = vunpack.c.h.b16 %v1437
        %v1477 = vunpack.c.l.b16 %v1438
        %v1478 = vunpack.c.h.b16 %v1438
        %v1479 = vunpack.c.l.b16 %v1439
        %v1480 = vunpack.c.h.b16 %v1439
        %v1481 = vunpack.c.l.b16 %v1440
        %v1482 = vunpack.c.h.b16 %v1440
        %v1483 = vunpack.c.l.b16 %v1441
        %v1484 = vunpack.c.h.b16 %v1441
        %v1485 = vunpack.c.l.b16 %v1442
        %v1486 = vunpack.c.h.b16 %v1442
        %v1487 = vunpack.c.l.b16 %v1443
        %v1488 = vunpack.c.h.b16 %v1443
        %v1489 = vunpack.c.l.b16 %v1444
        %v1490 = vunpack.c.h.b16 %v1444
        %v1491 = vunpack.c.l.b16 %v1445
        %v1492 = vunpack.c.h.b16 %v1445
        %v1493 = vunpack.c.l.b16 %v1446
        %v1494 = vunpack.c.h.b16 %v1446
        %v1495 = vpack.c.b16 %v1465, %v1463
        %v1496 = vpack.c.b16 %v1466, %v1464
        %v1497 = vpack.c.b16 %v1469, %v1467
        %v1498 = vpack.c.b16 %v1470, %v1468
        %v1499 = vpack.c.b16 %v1473, %v1471
        %v1500 = vpack.c.b16 %v1474, %v1472
        %v1501 = vpack.c.b16 %v1477, %v1475
        %v1502 = vpack.c.b16 %v1478, %v1476
        %v1503 = vpack.c.b16 %v1481, %v1479
        %v1504 = vpack.c.b16 %v1482, %v1480
        %v1505 = vpack.c.b16 %v1485, %v1483
        %v1506 = vpack.c.b16 %v1486, %v1484
        %v1507 = vpack.c.b16 %v1489, %v1487
        %v1508 = vpack.c.b16 %v1490, %v1488
        %v1509 = vpack.c.b16 %v1493, %v1491
        %v1510 = vpack.c.b16 %v1494, %v1492
        %1527 = vmatprep.subr.bf16.mxu0 %v1510
        %1528 = vmatpush1.bf16.msra.mxu0 %v1509
        %1529 = vmatprep.subr.bf16.mxu0 %v1508
        %1530 = vmatpush1.bf16.msra.mxu0 %v1507
        %1531 = vmatprep.subr.bf16.mxu0 %v1506
        %1532 = vmatpush1.bf16.msra.mxu0 %v1505
        %1533 = vmatprep.subr.bf16.mxu0 %v1504
        %1534 = vmatpush1.bf16.msra.mxu0 %v1503
        %1535 = vmatprep.subr.bf16.mxu0 %v1502
        %1536 = vmatpush1.bf16.msra.mxu0 %v1501
        %1537 = vmatprep.subr.bf16.mxu0 %v1500
        %1538 = vmatpush1.bf16.msra.mxu0 %v1499
        %1539 = vmatprep.subr.bf16.mxu0 %v1498
        %1540 = vmatpush1.bf16.msra.mxu0 %v1497
        %1541 = vmatprep.subr.bf16.mxu0 %v1496
        %1542 = vmatpush1.bf16.msra.mxu0 %v1495
        %1543 = vmatprep.subr.bf16.mxu0 0
        %1544 = vmatpush2.bf16.msra.mxu0 0
        %1545 = vmatprep.subr.bf16.mxu0 0
        %1546 = vmatpush2.bf16.msra.mxu0 0
        %1547 = vmatprep.subr.bf16.mxu0 0
        %1548 = vmatpush2.bf16.msra.mxu0 0
        %1549 = vmatprep.subr.bf16.mxu0 0
        %1550 = vmatpush2.bf16.msra.mxu0 0
        %1551 = vmatprep.subr.bf16.mxu0 0
        %1552 = vmatpush2.bf16.msra.mxu0 0
        %1553 = vmatprep.subr.bf16.mxu0 0
        %1554 = vmatpush2.bf16.msra.mxu0 0
        %1555 = vmatprep.subr.bf16.mxu0 0
        %1556 = vmatpush2.bf16.msra.mxu0 0
        %1557 = vmatprep.subr.bf16.mxu0 0
        %1558 = vmatpush2.bf16.msra.mxu0 0
        %1559 = vmatprep.mubr.bf16.mxu0 0
        %1560 = vmatmul.mubr.bf16.gmra.mxu0 %v1159
        %v1561 = vpop.f32.mrf.mxu0
        %v1562 = vadd.f32 0.0, %v1561
        %v1563 = vpop.f32.mrf.mxu0
        %v1564 = vadd.f32 0.0, %v1563
        %v1565 = vpop.f32.mrf.mxu0
        %v1566 = vadd.f32 0.0, %v1565
        %v1567 = vpop.f32.mrf.mxu0
        %v1568 = vadd.f32 0.0, %v1567
        %1569 = vmatprep.mubr.bf16.mxu0 0
        %1570 = vmatmul.mubr.bf16.gmra.mxu0 %v1160
        %v1571 = vpop.f32.mrf.mxu0
        %v1572 = vadd.f32 0.0, %v1571
        %v1573 = vpop.f32.mrf.mxu0
        %v1574 = vadd.f32 0.0, %v1573
        %v1575 = vpop.f32.mrf.mxu0
        %v1576 = vpop.f32.mrf.mxu0
        %1577 = vdwg.mxu0
        %v1578 = vadd.f32 %v1135, %v1562
        %v1579 = vadd.f32 %v1137, %v1564
        %v1580 = vadd.f32 %v1139, %v1566
        %v1581 = vadd.f32 %v1141, %v1568
        %v1582 = vadd.f32 %v1145, %v1572
        %v1583 = vadd.f32 %v1147, %v1574
        %v1584 = vld [vmem:[%s4] sm:$0x7]
        %v1586 = vlaneseq
        %v1587 = vshrl.u32 %v1586, 7
        %v1588 = vsub.s32 0, %v1587
        %v1589 = vrot.slane %v1584, %v1588
        %v1590 = vlaneseq
        %v1591 = vshrl.u32 %v1590, 7
        %v1592 = vsub.s32 1, %v1591
        %v1593 = vrot.slane %v1584, %v1592
        %v1594 = vlaneseq
        %v1595 = vshrl.u32 %v1594, 7
        %v1596 = vsub.s32 2, %v1595
        %v1597 = vrot.slane %v1584, %v1596
        %v1601 = vadd.f32 %v1421, %v1589
        %v1602 = vadd.f32 %v1422, %v1593
        %v1603 = vadd.f32 %v1423, %v1597
        %v1604 = vadd.f32 %v1424, %v1589
        %v1605 = vadd.f32 %v1425, %v1593
        %v1606 = vadd.f32 %v1426, %v1597
        %v1607 = vadd.f32 %v1427, %v1589
        %v1608 = vadd.f32 %v1428, %v1593
        %v1609 = vadd.f32 %v1429, %v1597
        %v1610 = vadd.f32 %v1601, %v1578
        %v1611 = vadd.f32 %v1602, %v1579
        %v1612 = vadd.f32 %v1604, %v1580
        %v1613 = vadd.f32 %v1605, %v1581
        %v1614 = vadd.f32 %v1607, %v1582
        %v1615 = vadd.f32 %v1608, %v1583
        %v1616 = vxor.u32 %v1610, 2147483648
        %v1617 = vxor.u32 %v1612, 2147483648
        %v1618 = vxor.u32 %v1614, 2147483648
        %v1619 = vmul.f32 %v1616, 1.442695
        %v1620 = vpow.pop %v1619
        %v1621 = vmul.f32 %v1617, 1.442695
        %v1622 = vpow.pop %v1621
        %v1623 = vmul.f32 %v1618, 1.442695
        %v1624 = vpow.pop %v1623
        %v1625 = vadd.f32 %v1620, 1.0
        %v1626 = vadd.f32 %v1622, 1.0
        %v1627 = vadd.f32 %v1624, 1.0
        %v1628 = vrcp.pop %v1625
        %v1629 = vmul.f32 1.0, %v1628
        %v1630 = vrcp.pop %v1626
        %v1631 = vmul.f32 1.0, %v1630
        %v1632 = vrcp.pop %v1627
        %v1633 = vmul.f32 1.0, %v1632
        %v1634 = vxor.u32 %v1611, 2147483648
        %v1635 = vxor.u32 %v1613, 2147483648
        %v1636 = vxor.u32 %v1615, 2147483648
        %v1637 = vmul.f32 %v1634, 1.442695
        %v1638 = vpow.pop %v1637
        %v1639 = vmul.f32 %v1635, 1.442695
        %v1640 = vpow.pop %v1639
        %v1641 = vmul.f32 %v1636, 1.442695
        %v1642 = vpow.pop %v1641
        %v1643 = vadd.f32 %v1638, 1.0
        %v1644 = vadd.f32 %v1640, 1.0
        %v1645 = vadd.f32 %v1642, 1.0
        %v1646 = vrcp.pop %v1643
        %v1647 = vmul.f32 1.0, %v1646
        %v1648 = vrcp.pop %v1644
        %v1649 = vmul.f32 1.0, %v1648
        %v1650 = vrcp.pop %v1645
        %v1651 = vmul.f32 1.0, %v1650
        %1652 = vst [vmem:[#allocation2] sm:$0x1] 0.0
        %1653 = vst [vmem:[#allocation2 + $0x13] sm:$0x1] 0.0
        %v1654 = vmul.f32 %v1629, %v380
        %v1655 = vmul.f32 %v1631, %v381
        %v1656 = vmul.f32 %v1633, %v382
        %1657 = vst [vmem:[#allocation2 + $0x1] sm:$0xff] %v1654
        %1658 = vst [vmem:[#allocation2 + $0x9] sm:$0xff] %v1655
        %1659 = vst [vmem:[#allocation2 + $0x11] sm:$0x3] %v1656
        %v1660 = vld [vmem:[#allocation2] sm:$0xff]
        %v1661 = vld [vmem:[#allocation2 + $0x8] sm:$0xff]
        %v1662 = vld [vmem:[#allocation2 + $0x10] sm:$0x3]
        %v1663 = vpack.c.bf16 %v1661, %v1660
        %v1664 = vpack.c.bf16 %v1662, %v1662
        %v1665 = vld [vmem:[#allocation7] sm:$0xf]
        %v1666 = vld [vmem:[#allocation7 + $0x4] sm:$0xf]
        %v1667 = vld [vmem:[#allocation7 + $0x8] sm:$0xf]
        %v1668 = vld [vmem:[#allocation7 + $0xc] sm:$0xf]
        %v1669 = vld [vmem:[#allocation7 + $0x10] sm:$0xf]
        %v1670 = vld [vmem:[#allocation7 + $0x14] sm:$0xf]
        %v1671 = vld [vmem:[#allocation7 + $0x18] sm:$0xf]
        %v1672 = vld [vmem:[#allocation7 + $0x1c] sm:$0xf]
        %v1673 = vld [vmem:[#allocation7 + $0x20] sm:$0xf]
        %v1674 = vld [vmem:[#allocation7 + $0x24] sm:$0xf]
        %v1675 = vld [vmem:[#allocation7 + $0x28] sm:$0xf]
        %v1676 = vld [vmem:[#allocation7 + $0x2c] sm:$0xf]
        %v1677 = vld [vmem:[#allocation7 + $0x30] sm:$0xf]
        %v1678 = vld [vmem:[#allocation7 + $0x34] sm:$0xf]
        %v1679 = vld [vmem:[#allocation7 + $0x38] sm:$0xf]
        %v1680 = vld [vmem:[#allocation7 + $0x3c] sm:$0xf]
        %v1697 = vunpack.c.l.b16 %v1665
        %v1698 = vunpack.c.l.b16 %v1666
        %v1699 = vunpack.c.l.b16 %v1667
        %v1700 = vunpack.c.l.b16 %v1668
        %v1701 = vunpack.c.l.b16 %v1669
        %v1702 = vunpack.c.l.b16 %v1670
        %v1703 = vunpack.c.l.b16 %v1671
        %v1704 = vunpack.c.l.b16 %v1672
        %v1705 = vunpack.c.l.b16 %v1673
        %v1706 = vunpack.c.l.b16 %v1674
        %v1707 = vunpack.c.l.b16 %v1675
        %v1708 = vunpack.c.l.b16 %v1676
        %v1709 = vunpack.c.l.b16 %v1677
        %v1710 = vunpack.c.l.b16 %v1678
        %v1711 = vunpack.c.l.b16 %v1679
        %v1712 = vunpack.c.l.b16 %v1680
        %v1713 = vpack.c.b16 %v1698, %v1697
        %v1714 = vpack.c.b16 %v1700, %v1699
        %v1715 = vpack.c.b16 %v1702, %v1701
        %v1716 = vpack.c.b16 %v1704, %v1703
        %v1717 = vpack.c.b16 %v1706, %v1705
        %v1718 = vpack.c.b16 %v1708, %v1707
        %v1719 = vpack.c.b16 %v1710, %v1709
        %v1720 = vpack.c.b16 %v1712, %v1711
        %1729 = vmatprep.subr.bf16.mxu0 0
        %1730 = vmatpush1.bf16.msra.mxu0 %v1720
        %1731 = vmatprep.subr.bf16.mxu0 0
        %1732 = vmatpush1.bf16.msra.mxu0 %v1719
        %1733 = vmatprep.subr.bf16.mxu0 0
        %1734 = vmatpush1.bf16.msra.mxu0 %v1718
        %1735 = vmatprep.subr.bf16.mxu0 0
        %1736 = vmatpush1.bf16.msra.mxu0 %v1717
        %1737 = vmatprep.subr.bf16.mxu0 0
        %1738 = vmatpush1.bf16.msra.mxu0 %v1716
        %1739 = vmatprep.subr.bf16.mxu0 0
        %1740 = vmatpush1.bf16.msra.mxu0 %v1715
        %1741 = vmatprep.subr.bf16.mxu0 0
        %1742 = vmatpush1.bf16.msra.mxu0 %v1714
        %1743 = vmatprep.subr.bf16.mxu0 0
        %1744 = vmatpush1.bf16.msra.mxu0 %v1713
        %1745 = vmatprep.subr.bf16.mxu0 0
        %1746 = vmatpush2.bf16.msra.mxu0 0
        %1747 = vmatprep.subr.bf16.mxu0 0
        %1748 = vmatpush2.bf16.msra.mxu0 0
        %1749 = vmatprep.subr.bf16.mxu0 0
        %1750 = vmatpush2.bf16.msra.mxu0 0
        %1751 = vmatprep.subr.bf16.mxu0 0
        %1752 = vmatpush2.bf16.msra.mxu0 0
        %1753 = vmatprep.subr.bf16.mxu0 0
        %1754 = vmatpush2.bf16.msra.mxu0 0
        %1755 = vmatprep.subr.bf16.mxu0 0
        %1756 = vmatpush2.bf16.msra.mxu0 0
        %1757 = vmatprep.subr.bf16.mxu0 0
        %1758 = vmatpush2.bf16.msra.mxu0 0
        %1759 = vmatprep.subr.bf16.mxu0 0
        %1760 = vmatpush2.bf16.msra.mxu0 0
        %1761 = vmatprep.mubr.bf16.mxu0 0
        %1762 = vmatmul.mubr.bf16.gmra.mxu0 %v1663
        %v1763 = vpop.f32.mrf.mxu0
        %v1764 = vadd.f32 0.0, %v1763
        %v1765 = vpop.f32.mrf.mxu0
        %v1766 = vpop.f32.mrf.mxu0
        %v1767 = vadd.f32 0.0, %v1766
        %v1768 = vpop.f32.mrf.mxu0
        %1769 = vmatprep.mubr.bf16.mxu0 0
        %1770 = vmatmul.mubr.bf16.gmra.mxu0 %v1664
        %v1771 = vpop.f32.mrf.mxu0
        %v1772 = vadd.f32 0.0, %v1771
        %v1773 = vpop.f32.mrf.mxu0
        %v1774 = vpop.f32.mrf.mxu0
        %v1775 = vpop.f32.mrf.mxu0
        %1776 = vdwg.mxu0
        %v1777 = vadd.f32 %v1603, %v1764
        %v1778 = vadd.f32 %v1606, %v1767
        %v1779 = vadd.f32 %v1609, %v1772
        %v1780 = vld [vmem:[#allocation2 + $0x1] sm:$0xff]
        %v1781 = vld [vmem:[#allocation2 + $0x9] sm:$0xff]
        %v1782 = vld [vmem:[#allocation2 + $0x11] sm:$0x3]
        %v1783 = vpack.c.bf16 %v1781, %v1780
        %v1784 = vpack.c.bf16 %v1782, %v1782
        %s1785 = scalar_lea.vmem [#allocation7], 64
        %v1786 = vld [vmem:[%s1785] sm:$0xf]
        %v1787 = vld [vmem:[%s1785 + $0x4] sm:$0xf]
        %v1788 = vld [vmem:[%s1785 + $0x8] sm:$0xf]
        %v1789 = vld [vmem:[%s1785 + $0xc] sm:$0xf]
        %v1790 = vld [vmem:[%s1785 + $0x10] sm:$0xf]
        %v1791 = vld [vmem:[%s1785 + $0x14] sm:$0xf]
        %v1792 = vld [vmem:[%s1785 + $0x18] sm:$0xf]
        %v1793 = vld [vmem:[%s1785 + $0x1c] sm:$0xf]
        %v1794 = vld [vmem:[%s1785 + $0x20] sm:$0xf]
        %v1795 = vld [vmem:[%s1785 + $0x24] sm:$0xf]
        %v1796 = vld [vmem:[%s1785 + $0x28] sm:$0xf]
        %v1797 = vld [vmem:[%s1785 + $0x2c] sm:$0xf]
        %v1798 = vld [vmem:[%s1785 + $0x30] sm:$0xf]
        %v1799 = vld [vmem:[%s1785 + $0x34] sm:$0xf]
        %v1800 = vld [vmem:[%s1785 + $0x38] sm:$0xf]
        %v1801 = vld [vmem:[%s1785 + $0x3c] sm:$0xf]
        %v1818 = vunpack.c.l.b16 %v1786
        %v1819 = vunpack.c.l.b16 %v1787
        %v1820 = vunpack.c.l.b16 %v1788
        %v1821 = vunpack.c.l.b16 %v1789
        %v1822 = vunpack.c.l.b16 %v1790
        %v1823 = vunpack.c.l.b16 %v1791
        %v1824 = vunpack.c.l.b16 %v1792
        %v1825 = vunpack.c.l.b16 %v1793
        %v1826 = vunpack.c.l.b16 %v1794
        %v1827 = vunpack.c.l.b16 %v1795
        %v1828 = vunpack.c.l.b16 %v1796
        %v1829 = vunpack.c.l.b16 %v1797
        %v1830 = vunpack.c.l.b16 %v1798
        %v1831 = vunpack.c.l.b16 %v1799
        %v1832 = vunpack.c.l.b16 %v1800
        %v1833 = vunpack.c.l.b16 %v1801
        %v1834 = vpack.c.b16 %v1819, %v1818
        %v1835 = vpack.c.b16 %v1821, %v1820
        %v1836 = vpack.c.b16 %v1823, %v1822
        %v1837 = vpack.c.b16 %v1825, %v1824
        %v1838 = vpack.c.b16 %v1827, %v1826
        %v1839 = vpack.c.b16 %v1829, %v1828
        %v1840 = vpack.c.b16 %v1831, %v1830
        %v1841 = vpack.c.b16 %v1833, %v1832
        %1850 = vmatprep.subr.bf16.mxu0 0
        %1851 = vmatpush1.bf16.msra.mxu0 %v1841
        %1852 = vmatprep.subr.bf16.mxu0 0
        %1853 = vmatpush1.bf16.msra.mxu0 %v1840
        %1854 = vmatprep.subr.bf16.mxu0 0
        %1855 = vmatpush1.bf16.msra.mxu0 %v1839
        %1856 = vmatprep.subr.bf16.mxu0 0
        %1857 = vmatpush1.bf16.msra.mxu0 %v1838
        %1858 = vmatprep.subr.bf16.mxu0 0
        %1859 = vmatpush1.bf16.msra.mxu0 %v1837
        %1860 = vmatprep.subr.bf16.mxu0 0
        %1861 = vmatpush1.bf16.msra.mxu0 %v1836
        %1862 = vmatprep.subr.bf16.mxu0 0
        %1863 = vmatpush1.bf16.msra.mxu0 %v1835
        %1864 = vmatprep.subr.bf16.mxu0 0
        %1865 = vmatpush1.bf16.msra.mxu0 %v1834
        %1866 = vmatprep.subr.bf16.mxu0 0
        %1867 = vmatpush2.bf16.msra.mxu0 0
        %1868 = vmatprep.subr.bf16.mxu0 0
        %1869 = vmatpush2.bf16.msra.mxu0 0
        %1870 = vmatprep.subr.bf16.mxu0 0
        %1871 = vmatpush2.bf16.msra.mxu0 0
        %1872 = vmatprep.subr.bf16.mxu0 0
        %1873 = vmatpush2.bf16.msra.mxu0 0
        %1874 = vmatprep.subr.bf16.mxu0 0
        %1875 = vmatpush2.bf16.msra.mxu0 0
        %1876 = vmatprep.subr.bf16.mxu0 0
        %1877 = vmatpush2.bf16.msra.mxu0 0
        %1878 = vmatprep.subr.bf16.mxu0 0
        %1879 = vmatpush2.bf16.msra.mxu0 0
        %1880 = vmatprep.subr.bf16.mxu0 0
        %1881 = vmatpush2.bf16.msra.mxu0 0
        %1882 = vmatprep.mubr.bf16.mxu0 0
        %1883 = vmatmul.mubr.bf16.gmra.mxu0 %v1783
        %v1884 = vpop.f32.mrf.mxu0
        %v1885 = vadd.f32 0.0, %v1884
        %v1886 = vpop.f32.mrf.mxu0
        %v1887 = vpop.f32.mrf.mxu0
        %v1888 = vadd.f32 0.0, %v1887
        %v1889 = vpop.f32.mrf.mxu0
        %1890 = vmatprep.mubr.bf16.mxu0 0
        %1891 = vmatmul.mubr.bf16.gmra.mxu0 %v1784
        %v1892 = vpop.f32.mrf.mxu0
        %v1893 = vadd.f32 0.0, %v1892
        %v1894 = vpop.f32.mrf.mxu0
        %v1895 = vpop.f32.mrf.mxu0
        %v1896 = vpop.f32.mrf.mxu0
        %1897 = vdwg.mxu0
        %v1898 = vadd.f32 %v1777, %v1885
        %v1899 = vadd.f32 %v1778, %v1888
        %v1900 = vadd.f32 %v1779, %v1893
        %v1901 = vld [vmem:[#allocation2 + $0x2] sm:$0xff]
        %v1902 = vld [vmem:[#allocation2 + $0xa] sm:$0xff]
        %v1903 = vld [vmem:[#allocation2 + $0x12] sm:$0x3]
        %v1904 = vpack.c.bf16 %v1902, %v1901
        %v1905 = vpack.c.bf16 %v1903, %v1903
        %s1906 = scalar_lea.vmem [#allocation7], 128
        %v1907 = vld [vmem:[%s1906] sm:$0xf]
        %v1908 = vld [vmem:[%s1906 + $0x4] sm:$0xf]
        %v1909 = vld [vmem:[%s1906 + $0x8] sm:$0xf]
        %v1910 = vld [vmem:[%s1906 + $0xc] sm:$0xf]
        %v1911 = vld [vmem:[%s1906 + $0x10] sm:$0xf]
        %v1912 = vld [vmem:[%s1906 + $0x14] sm:$0xf]
        %v1913 = vld [vmem:[%s1906 + $0x18] sm:$0xf]
        %v1914 = vld [vmem:[%s1906 + $0x1c] sm:$0xf]
        %v1915 = vld [vmem:[%s1906 + $0x20] sm:$0xf]
        %v1916 = vld [vmem:[%s1906 + $0x24] sm:$0xf]
        %v1917 = vld [vmem:[%s1906 + $0x28] sm:$0xf]
        %v1918 = vld [vmem:[%s1906 + $0x2c] sm:$0xf]
        %v1919 = vld [vmem:[%s1906 + $0x30] sm:$0xf]
        %v1920 = vld [vmem:[%s1906 + $0x34] sm:$0xf]
        %v1921 = vld [vmem:[%s1906 + $0x38] sm:$0xf]
        %v1922 = vld [vmem:[%s1906 + $0x3c] sm:$0xf]
        %v1939 = vunpack.c.l.b16 %v1907
        %v1940 = vunpack.c.l.b16 %v1908
        %v1941 = vunpack.c.l.b16 %v1909
        %v1942 = vunpack.c.l.b16 %v1910
        %v1943 = vunpack.c.l.b16 %v1911
        %v1944 = vunpack.c.l.b16 %v1912
        %v1945 = vunpack.c.l.b16 %v1913
        %v1946 = vunpack.c.l.b16 %v1914
        %v1947 = vunpack.c.l.b16 %v1915
        %v1948 = vunpack.c.l.b16 %v1916
        %v1949 = vunpack.c.l.b16 %v1917
        %v1950 = vunpack.c.l.b16 %v1918
        %v1951 = vunpack.c.l.b16 %v1919
        %v1952 = vunpack.c.l.b16 %v1920
        %v1953 = vunpack.c.l.b16 %v1921
        %v1954 = vunpack.c.l.b16 %v1922
        %v1955 = vpack.c.b16 %v1940, %v1939
        %v1956 = vpack.c.b16 %v1942, %v1941
        %v1957 = vpack.c.b16 %v1944, %v1943
        %v1958 = vpack.c.b16 %v1946, %v1945
        %v1959 = vpack.c.b16 %v1948, %v1947
        %v1960 = vpack.c.b16 %v1950, %v1949
        %v1961 = vpack.c.b16 %v1952, %v1951
        %v1962 = vpack.c.b16 %v1954, %v1953
        %1971 = vmatprep.subr.bf16.mxu0 0
        %1972 = vmatpush1.bf16.msra.mxu0 %v1962
        %1973 = vmatprep.subr.bf16.mxu0 0
        %1974 = vmatpush1.bf16.msra.mxu0 %v1961
        %1975 = vmatprep.subr.bf16.mxu0 0
        %1976 = vmatpush1.bf16.msra.mxu0 %v1960
        %1977 = vmatprep.subr.bf16.mxu0 0
        %1978 = vmatpush1.bf16.msra.mxu0 %v1959
        %1979 = vmatprep.subr.bf16.mxu0 0
        %1980 = vmatpush1.bf16.msra.mxu0 %v1958
        %1981 = vmatprep.subr.bf16.mxu0 0
        %1982 = vmatpush1.bf16.msra.mxu0 %v1957
        %1983 = vmatprep.subr.bf16.mxu0 0
        %1984 = vmatpush1.bf16.msra.mxu0 %v1956
        %1985 = vmatprep.subr.bf16.mxu0 0
        %1986 = vmatpush1.bf16.msra.mxu0 %v1955
        %1987 = vmatprep.subr.bf16.mxu0 0
        %1988 = vmatpush2.bf16.msra.mxu0 0
        %1989 = vmatprep.subr.bf16.mxu0 0
        %1990 = vmatpush2.bf16.msra.mxu0 0
        %1991 = vmatprep.subr.bf16.mxu0 0
        %1992 = vmatpush2.bf16.msra.mxu0 0
        %1993 = vmatprep.subr.bf16.mxu0 0
        %1994 = vmatpush2.bf16.msra.mxu0 0
        %1995 = vmatprep.subr.bf16.mxu0 0
        %1996 = vmatpush2.bf16.msra.mxu0 0
        %1997 = vmatprep.subr.bf16.mxu0 0
        %1998 = vmatpush2.bf16.msra.mxu0 0
        %1999 = vmatprep.subr.bf16.mxu0 0
        %2000 = vmatpush2.bf16.msra.mxu0 0
        %2001 = vmatprep.subr.bf16.mxu0 0
        %2002 = vmatpush2.bf16.msra.mxu0 0
        %2003 = vmatprep.mubr.bf16.mxu0 0
        %2004 = vmatmul.mubr.bf16.gmra.mxu0 %v1904
        %v2005 = vpop.f32.mrf.mxu0
        %v2006 = vadd.f32 0.0, %v2005
        %v2007 = vpop.f32.mrf.mxu0
        %v2008 = vpop.f32.mrf.mxu0
        %v2009 = vadd.f32 0.0, %v2008
        %v2010 = vpop.f32.mrf.mxu0
        %2011 = vmatprep.mubr.bf16.mxu0 0
        %2012 = vmatmul.mubr.bf16.gmra.mxu0 %v1905
        %v2013 = vpop.f32.mrf.mxu0
        %v2014 = vadd.f32 0.0, %v2013
        %v2015 = vpop.f32.mrf.mxu0
        %v2016 = vpop.f32.mrf.mxu0
        %v2017 = vpop.f32.mrf.mxu0
        %2018 = vdwg.mxu0
        %v2019 = vadd.f32 %v1898, %v2006
        %v2020 = vadd.f32 %v1899, %v2009
        %v2021 = vadd.f32 %v1900, %v2014
        %v2022 = vtanh.pop %v2019
        %v2023 = vtanh.pop %v2020
        %v2024 = vtanh.pop %v2021
        %v2025 = vsub.f32 1.0, %v1647
        %v2026 = vsub.f32 1.0, %v1649
        %v2027 = vsub.f32 1.0, %v1651
        %v2028 = vmul.f32 %v2025, %v380
        %v2029 = vmul.f32 %v2026, %v381
        %v2030 = vmul.f32 %v2027, %v382
        %v2031 = vmul.f32 %v1647, %v2022
        %v2032 = vmul.f32 %v1649, %v2023
        %v2033 = vmul.f32 %v1651, %v2024
        %v2034 = vadd.f32 %v2028, %v2031
        %v2035 = vadd.f32 %v2029, %v2032
        %v2036 = vadd.f32 %v2030, %v2033
        %2037 = vst [vmem:[%s315] sm:$0xff] %v2034
        %2038 = vst [vmem:[%s315 + $0x8] sm:$0xff] %v2035
        %2039 = vst [vmem:[%s315 + $0x10] sm:$0x3] %v2036
        %p2040 = scmp.lt.s32.totalorder %s19, 1
        %s2041 = scalar_select %p2040, %s19, 1
        %s2042 = smul.addr %s2041, 3
        %s2043 = smul.addr %s2042, 8
        %s2044 = scalar_lea.vmem %s6, %s2043
        // Predicated region
        $region57: #{tpu_custom_call.1} parent=43 // pred_check
          %p2045 = pneg %p173
        $region58: #{tpu_custom_call.1} parent=43 // pred_check_branch
          %2047 = sbr.rel (%p2045) target = $region60
        $region59: #{tpu_custom_call.1} parent=43 // pred_region
          _
        $region60: #{tpu_custom_call.1} parent=43 // pred_fallthru
          _
      $region44: #{tpu_custom_call.1} parent=5 // pred_fallthru
        _
      %p2048 = scmp.le.s32.totalorder 2, %s14
      // Predicated region
      $region61: #{tpu_custom_call.1} parent=5 // pred_check
        %p2049 = pneg %p2048
      $region62: #{tpu_custom_call.1} parent=5 // pred_check_branch
        %2051 = sbr.rel (%p2049) target = $region64
      $region63: #{tpu_custom_call.1} parent=5 // pred_region
        %s2052 = ssub.s32 %s14, 2
        // Predicated region
        $region65: #{tpu_custom_call.1} parent=63 // pred_check
          %p2053 = pneg %p179
        $region66: #{tpu_custom_call.1} parent=63 // pred_check_branch
          %2055 = sbr.rel (%p2053) target = $region68
        $region67: #{tpu_custom_call.1} parent=63 // pred_region
          %p2056 = scmp.lt.s32.totalorder %s20, 1
          %s2057 = scalar_select %p2056, %s20, 1
          %s2058 = smul.addr %s2057, 3
          %s2059 = smul.addr %s2058, 8
          %s2060 = scalar_lea.vmem %s6, %s2059
        $region68: #{tpu_custom_call.1} parent=63 // pred_fallthru
          _
      $region64: #{tpu_custom_call.1} parent=5 // pred_fallthru
        _
    $region6: #{tpu_custom_call.1} parent=1 // loop_footer
      %s18 = sadd.s32 1, %s14
    $region7: #{tpu_custom_call.1} parent=1 // loop_footer_branch
      %13 = sbr.rel target = $region3
    $region8: #{tpu_custom_call.1} parent=1 // loop_exit
      _
    %2061 = vsyncpa [#allocation4], 1
    %s2062 = scalar_lea.sflag [#allocation4], 1
    %2063 = vsyncpa %s2062, 1
    %2064 = vsyncpa [#allocation6], 1

</llo_original>
